<compile_context>
chip_gen: v7x
topology: tpu7x:2x2x1
jax: 0.10.0
libtpu: 0.0.40
codegen_flags: <defaults>
</compile_context>

<pallas_src>
import jax
import jax.numpy as jnp
from jax.experimental import pallas as pl
from jax.experimental.pallas import tpu as pltpu

SIZE = (384, 256, 128, 64)
N_CLASSES = 1            # sigmoid head
N_GROUPS = 1
N_INSTANCES = 8          # instances per bag
MAX_BAGS_PER_BLOCK = 128  # up to M = 128 * 8 = 1024 matmul rows per grid step
HEAD_WIDTH = 128         # lane-dense packed head / output width


def minet_lnl_kernel(x_ref, w1_ref, b1_ref, w2_ref, b2_ref, w3_ref, b3_ref,
                     wh_ref, bh_ref, out_ref):
    """One grid step = one block of `bags_per_block` bags.

    x_ref is the natural (bags_per_block, n_instances, d_in) f32 tile; it is
    flattened to (M, d_in) and cast to bf16 here (contiguous sublane merge +
    VPU pack -> cheap), so no wrapper-side pre-pass / extra HBM round trip.
    """
    bpb, n_inst, d_in = x_ref.shape
    m = bpb * n_inst
    x = x_ref[...].reshape(m, d_in).astype(jnp.bfloat16)             # (M, 384)

    # fc1/fc2/fc3: bf16 MXU operands, f32 accumulation; bias add + relu in f32
    # (v5e VPU has no bf16 compute), repacked to bf16 for the next MXU op.
    h1 = jnp.dot(x, w1_ref[...], preferred_element_type=jnp.float32) + b1_ref[...]
    h1 = jnp.maximum(h1, 0.0).astype(jnp.bfloat16)                   # (M, 256)
    h2 = jnp.dot(h1, w2_ref[...], preferred_element_type=jnp.float32) + b2_ref[...]
    h2 = jnp.maximum(h2, 0.0).astype(jnp.bfloat16)                   # (M, 128)
    feats = jnp.dot(h2, w3_ref[...], preferred_element_type=jnp.float32) + b3_ref[...]
    feats = jnp.maximum(feats, 0.0)                                  # (M, 64) f32
    # dropout is identity in eval mode; grad_reverse is identity in forward.

    # MIL max pooling over the instances of each bag (pooling_mode='max').
    # Rows are bag-major, so this is a sublane reduce over the middle axis
    # (XLU/VPU slot, which is otherwise idle here).
    feat_dim = feats.shape[-1]
    pooled = jnp.max(feats.reshape(bpb, n_inst, feat_dim), axis=1)   # (bpb, 64)

    # Both classifier heads fused in one lane-dense bf16 matmul (f32 accum):
    #   lane 0 -> sigmoid(main logits) = preds
    #   lane 1 -> main logits
    #   lane 2 -> aux (FeaturePooling) logits
    #   lanes 3..127 -> zero padding (keeps the output store unmasked).
    head = jnp.dot(pooled.astype(jnp.bfloat16), wh_ref[...],
                   preferred_element_type=jnp.float32) + bh_ref[...]  # (bpb, 128)
    lane = jax.lax.broadcasted_iota(jnp.int32, head.shape, 1)
    out_ref[...] = jnp.where(lane == 0, jax.nn.sigmoid(head), head)
    # TODO(synk): for n_classes > 1, preds would be softmax(logits, axis=-1)
    # and the packed-lane layout would need one lane range per head.


def _choose_bags_per_block(num_bags: int) -> int:
    """Bags per grid step (M = bags * n_instances matmul rows per step)."""
    if num_bags <= 8:
        # Single block; block dims equal the full array dims, so the (8, 128)
        # tiling constraint is satisfied even for tiny batches.
        return num_bags
    # Multiple of 8 (sublane-aligned output block), <= num_bags, capped so the
    # x tile + f32 intermediates stay trivially inside VMEM on all generations.
    bpb = min(MAX_BAGS_PER_BLOCK, (num_bags // 8) * 8)
    # Prefer >= 2 grid blocks so dimension_semantics=("parallel",) can shard
    # bag-blocks across both v7x TensorCores (skip for tiny problems where the
    # per-step pipeline overhead would dominate).
    if pl.cdiv(num_bags, bpb) < 2 and bpb >= 32:
        bpb = max(16, ((bpb // 2 + 7) // 8) * 8)
    return bpb


@jax.jit
def minet_lnl_forward(x, params):
    """x: (num_bags, n_instances, 384) or (n_instances, 384) float32.

    Returns (preds, logits, logits_aux), shapes (num_bags, 1) each
    ((1, 1) for a single 2-D bag, matching the PyTorch module).
    """
    w1, b1, w2, b2, w3, b3, wc, bc, wg, bg = params
    if x.ndim == 2:
        x = x[None]
    num_bags, n_inst, d_in = x.shape

    bpb = _choose_bags_per_block(num_bags)
    nblk = pl.cdiv(num_bags, bpb)

    # bf16 MXU operands (f32 accumulation happens inside the kernel).
    w1b = w1.astype(jnp.bfloat16)
    w2b = w2.astype(jnp.bfloat16)
    w3b = w3.astype(jnp.bfloat16)

    # Pack both classifier heads into one lane-dense (64, 128) bf16 weight.
    # Biases stay f32 (tiny, slightly more accurate bias add).
    feat_dim = w3.shape[1]
    wh = jnp.zeros((feat_dim, HEAD_WIDTH), jnp.float32)
    wh = wh.at[:, 0:1].set(wc).at[:, 1:2].set(wc).at[:, 2:3].set(wg)
    wh = wh.astype(jnp.bfloat16)
    bh = jnp.zeros((1, HEAD_WIDTH), jnp.float32)
    bh = bh.at[:, 0:1].set(bc).at[:, 1:2].set(bc).at[:, 2:3].set(bg)

    const2 = lambda b: (0, 0)   # weights/biases resident in VMEM across grid steps

    out = pl.pallas_call(
        minet_lnl_kernel,
        out_shape=jax.ShapeDtypeStruct((num_bags, HEAD_WIDTH), jnp.float32),
        grid=(nblk,),
        in_specs=[
            # Natural-layout x tile, read straight from the caller's f32 array.
            # Ragged tails: OOB rows in the last block stay row-local through
            # the MLP + per-bag pooling, and their output rows are clipped.
            pl.BlockSpec((bpb, n_inst, d_in), lambda b: (b, 0, 0)),
            pl.BlockSpec(w1b.shape, const2),
            pl.BlockSpec(b1.shape, const2),
            pl.BlockSpec(w2b.shape, const2),
            pl.BlockSpec(b2.shape, const2),
            pl.BlockSpec(w3b.shape, const2),
            pl.BlockSpec(b3.shape, const2),
            pl.BlockSpec(wh.shape, const2),
            pl.BlockSpec(bh.shape, const2),
        ],
        out_specs=pl.BlockSpec((bpb, HEAD_WIDTH), lambda b: (b, 0)),
        compiler_params=pltpu.CompilerParams(
            dimension_semantics=("parallel",)),  # bag blocks shard across TCs (v7x)
    )(x, w1b, b1, w2b, b2, w3b, b3, wh, bh)

    preds = out[:, 0:N_CLASSES]
    logits = out[:, N_CLASSES:2 * N_CLASSES]
    logits_aux = out[:, 2 * N_CLASSES:2 * N_CLASSES + N_GROUPS]
    return preds, logits, logits_aux


def init_params(key):
    """Deterministic init mimicking PyTorch Linear default (uniform +/-1/sqrt(fan_in)).

    Weights are stored as (in_features, out_features) = W_pt.T; biases as (1, out).
    """
    dims = [
        (SIZE[0], SIZE[1]),      # fc1
        (SIZE[1], SIZE[2]),      # fc2
        (SIZE[2], SIZE[3]),      # fc3
        (SIZE[3], N_CLASSES),    # main classifier
        (SIZE[3], N_GROUPS),     # aux (FeaturePooling) classifier
    ]
    params = []
    for (fan_in, fan_out) in dims:
        key, kw, kb = jax.random.split(key, 3)
        bound = 1.0 / (fan_in ** 0.5)
        w = jax.random.uniform(kw, (fan_in, fan_out), jnp.float32, -bound, bound)
        b = jax.random.uniform(kb, (1, fan_out), jnp.float32, -bound, bound)
        params.extend([w, b])
    return tuple(params)


def reference_forward(x, params):
    """Pure-JAX reference on the same reduced-precision path as the kernel
    (bf16 matmul operands, f32 accumulation).  Deviates from a PyTorch f32
    forward only at the ~1e-2 level -- fine for eval-mode inference."""
    w1, b1, w2, b2, w3, b3, wc, bc, wg, bg = params
    bf, f32 = jnp.bfloat16, jnp.float32
    h = jnp.maximum(jnp.dot(x.astype(bf), w1.astype(bf),
                            preferred_element_type=f32) + b1, 0.0)
    h = jnp.maximum(jnp.dot(h.astype(bf), w2.astype(bf),
                            preferred_element_type=f32) + b2, 0.0)
    feats = jnp.maximum(jnp.dot(h.astype(bf), w3.astype(bf),
                                preferred_element_type=f32) + b3, 0.0)
    pooled = jnp.max(feats, axis=1)                  # (B, 64)
    pooled_bf = pooled.astype(bf)
    logits = jnp.dot(pooled_bf, wc.astype(bf), preferred_element_type=f32) + bc
    preds = jax.nn.sigmoid(logits)
    logits_aux = jnp.dot(pooled_bf, wg.astype(bf), preferred_element_type=f32) + bg
    return preds, logits, logits_aux


if __name__ == "__main__":
    key = jax.random.PRNGKey(0)
    key_x, key_p = jax.random.split(key)

    num_bags = 32                                    # -> 2 grid blocks of 16 bags
    x = jax.random.normal(key_x, (num_bags, N_INSTANCES, SIZE[0]), jnp.float32)
    params = init_params(key_p)

    preds, logits, logits_aux = minet_lnl_forward(x, params)
    jax.block_until_ready((preds, logits, logits_aux))

    # sanity check against the pure-JAX reference
    r_preds, r_logits, r_logits_aux = reference_forward(x, params)
    assert preds.shape == (num_bags, N_CLASSES)
    assert logits.shape == (num_bags, N_CLASSES)
    assert logits_aux.shape == (num_bags, N_GROUPS)
    assert jnp.allclose(preds, r_preds, atol=1e-2, rtol=1e-2)
    assert jnp.allclose(logits, r_logits, atol=1e-2, rtol=1e-2)
    assert jnp.allclose(logits_aux, r_logits_aux, atol=1e-2, rtol=1e-2)

    print("KERNEL_OK")
</pallas_src>

<mosaic_0001>
module attributes {stable_mosaic.version = 11 : i64} {
  func.func @minet_lnl_kernel(%arg0: i32, %arg1: memref<16x8x384xf32, #tpu.memory_space<vmem>>, %arg2: memref<384x256xbf16, #tpu.memory_space<vmem>>, %arg3: memref<1x256xf32, #tpu.memory_space<vmem>>, %arg4: memref<256x128xbf16, #tpu.memory_space<vmem>>, %arg5: memref<1x128xf32, #tpu.memory_space<vmem>>, %arg6: memref<128x64xbf16, #tpu.memory_space<vmem>>, %arg7: memref<1x64xf32, #tpu.memory_space<vmem>>, %arg8: memref<64x128xbf16, #tpu.memory_space<vmem>>, %arg9: memref<1x128xf32, #tpu.memory_space<vmem>>, %arg10: memref<16x128xf32, #tpu.memory_space<vmem>>) attributes {dimension_semantics = [#tpu.dimension_semantics<parallel>], iteration_bounds = array<i64: 2>, scalar_prefetch = 0 : i64, scratch_operands = 0 : i64, tpu.core_type = #tpu.core_type<tc>, window_params = [{transform_indices = @transform_0, window_bounds = array<i64: 16, 8, 384>}, {pipeline_mode = #tpu.pipeline_mode<synchronous>, transform_indices = @transform_1, window_bounds = array<i64: 384, 256>}, {pipeline_mode = #tpu.pipeline_mode<synchronous>, transform_indices = @transform_2, window_bounds = array<i64: 1, 256>}, {pipeline_mode = #tpu.pipeline_mode<synchronous>, transform_indices = @transform_3, window_bounds = array<i64: 256, 128>}, {pipeline_mode = #tpu.pipeline_mode<synchronous>, transform_indices = @transform_4, window_bounds = array<i64: 1, 128>}, {pipeline_mode = #tpu.pipeline_mode<synchronous>, transform_indices = @transform_5, window_bounds = array<i64: 128, 64>}, {pipeline_mode = #tpu.pipeline_mode<synchronous>, transform_indices = @transform_6, window_bounds = array<i64: 1, 64>}, {pipeline_mode = #tpu.pipeline_mode<synchronous>, transform_indices = @transform_7, window_bounds = array<i64: 64, 128>}, {pipeline_mode = #tpu.pipeline_mode<synchronous>, transform_indices = @transform_8, window_bounds = array<i64: 1, 128>}, {transform_indices = @transform_9, window_bounds = array<i64: 16, 128>}]} {
    %c0 = arith.constant 0 : index
    %c0_0 = arith.constant 0 : index
    %c0_1 = arith.constant 0 : index
    %0 = vector.load %arg1[%c0, %c0_0, %c0_1] : memref<16x8x384xf32, #tpu.memory_space<vmem>>, vector<16x8x384xf32>
    %1 = vector.shape_cast %0 : vector<16x8x384xf32> to vector<128x384xf32>
    %2 = arith.truncf %1 : vector<128x384xf32> to vector<128x384xbf16>
    %c0_2 = arith.constant 0 : index
    %c0_3 = arith.constant 0 : index
    %3 = vector.load %arg2[%c0_2, %c0_3] : memref<384x256xbf16, #tpu.memory_space<vmem>>, vector<384x256xbf16>
    %cst = arith.constant dense<0.000000e+00> : vector<128x256xf32>
    %4 = tpu.matmul %2, %3, %cst {dimension_numbers = #tpu.dot_dimension_numbers<[1], [0], [0], [1], [0, 0, 1, 1], [], []>} : vector<128x384xbf16>, vector<384x256xbf16>, vector<128x256xf32> -> vector<128x256xf32>
    %c0_4 = arith.constant 0 : index
    %c0_5 = arith.constant 0 : index
    %5 = vector.load %arg3[%c0_4, %c0_5] : memref<1x256xf32, #tpu.memory_space<vmem>>, vector<1x256xf32>
    %6 = vector.broadcast %5 : vector<1x256xf32> to vector<128x256xf32>
    %7 = arith.addf %4, %6 : vector<128x256xf32>
    %cst_6 = arith.constant 0.000000e+00 : f32
    %8 = vector.broadcast %cst_6 : f32 to vector<128x256xf32>
    %9 = arith.maximumf %7, %8 : vector<128x256xf32>
    %10 = arith.truncf %9 : vector<128x256xf32> to vector<128x256xbf16>
    %c0_7 = arith.constant 0 : index
    %c0_8 = arith.constant 0 : index
    %11 = vector.load %arg4[%c0_7, %c0_8] : memref<256x128xbf16, #tpu.memory_space<vmem>>, vector<256x128xbf16>
    %cst_9 = arith.constant dense<0.000000e+00> : vector<128x128xf32>
    %12 = tpu.matmul %10, %11, %cst_9 {dimension_numbers = #tpu.dot_dimension_numbers<[1], [0], [0], [1], [0, 0, 1, 1], [], []>} : vector<128x256xbf16>, vector<256x128xbf16>, vector<128x128xf32> -> vector<128x128xf32>
    %c0_10 = arith.constant 0 : index
    %c0_11 = arith.constant 0 : index
    %13 = vector.load %arg5[%c0_10, %c0_11] : memref<1x128xf32, #tpu.memory_space<vmem>>, vector<1x128xf32>
    %14 = vector.broadcast %13 : vector<1x128xf32> to vector<128x128xf32>
    %15 = arith.addf %12, %14 : vector<128x128xf32>
    %cst_12 = arith.constant 0.000000e+00 : f32
    %16 = vector.broadcast %cst_12 : f32 to vector<128x128xf32>
    %17 = arith.maximumf %15, %16 : vector<128x128xf32>
    %18 = arith.truncf %17 : vector<128x128xf32> to vector<128x128xbf16>
    %c0_13 = arith.constant 0 : index
    %c0_14 = arith.constant 0 : index
    %19 = vector.load %arg6[%c0_13, %c0_14] : memref<128x64xbf16, #tpu.memory_space<vmem>>, vector<128x64xbf16>
    %cst_15 = arith.constant dense<0.000000e+00> : vector<128x64xf32>
    %20 = tpu.matmul %18, %19, %cst_15 {dimension_numbers = #tpu.dot_dimension_numbers<[1], [0], [0], [1], [0, 0, 1, 1], [], []>} : vector<128x128xbf16>, vector<128x64xbf16>, vector<128x64xf32> -> vector<128x64xf32>
    %c0_16 = arith.constant 0 : index
    %c0_17 = arith.constant 0 : index
    %21 = vector.load %arg7[%c0_16, %c0_17] : memref<1x64xf32, #tpu.memory_space<vmem>>, vector<1x64xf32>
    %22 = vector.broadcast %21 : vector<1x64xf32> to vector<128x64xf32>
    %23 = arith.addf %20, %22 : vector<128x64xf32>
    %cst_18 = arith.constant 0.000000e+00 : f32
    %24 = vector.broadcast %cst_18 : f32 to vector<128x64xf32>
    %25 = arith.maximumf %23, %24 : vector<128x64xf32>
    %26 = vector.shape_cast %25 : vector<128x64xf32> to vector<16x8x64xf32>
    %cst_19 = arith.constant dense<0xFF800000> : vector<16x64xf32>
    %27 = vector.multi_reduction <maximumf>, %26, %cst_19 [1] : vector<16x8x64xf32> to vector<16x64xf32>
    %28 = arith.truncf %27 : vector<16x64xf32> to vector<16x64xbf16>
    %c0_20 = arith.constant 0 : index
    %c0_21 = arith.constant 0 : index
    %29 = vector.load %arg8[%c0_20, %c0_21] : memref<64x128xbf16, #tpu.memory_space<vmem>>, vector<64x128xbf16>
    %cst_22 = arith.constant dense<0.000000e+00> : vector<16x128xf32>
    %30 = tpu.matmul %28, %29, %cst_22 {dimension_numbers = #tpu.dot_dimension_numbers<[1], [0], [0], [1], [0, 0, 1, 1], [], []>} : vector<16x64xbf16>, vector<64x128xbf16>, vector<16x128xf32> -> vector<16x128xf32>
    %c0_23 = arith.constant 0 : index
    %c0_24 = arith.constant 0 : index
    %31 = vector.load %arg9[%c0_23, %c0_24] : memref<1x128xf32, #tpu.memory_space<vmem>>, vector<1x128xf32>
    %32 = vector.broadcast %31 : vector<1x128xf32> to vector<16x128xf32>
    %33 = arith.addf %30, %32 : vector<16x128xf32>
    %34 = tpu.iota {dimensions = array<i32: 1>} : vector<16x128xi32>
    %c0_i32 = arith.constant 0 : i32
    %35 = vector.broadcast %c0_i32 : i32 to vector<16x128xi32>
    %36 = arith.cmpi eq, %34, %35 : vector<16x128xi32>
    %37 = arith.negf %33 : vector<16x128xf32>
    %38 = math.exp %37 : vector<16x128xf32>
    %cst_25 = arith.constant 1.000000e+00 : f32
    %39 = vector.broadcast %cst_25 : f32 to vector<16x128xf32>
    %40 = arith.addf %39, %38 : vector<16x128xf32>
    %41 = arith.divf %39, %40 : vector<16x128xf32>
    %42 = arith.select %36, %41, %33 : vector<16x128xi1>, vector<16x128xf32>
    %c0_26 = arith.constant 0 : index
    %c0_27 = arith.constant 0 : index
    %43 = vector.load %arg10[%c0_26, %c0_27] : memref<16x128xf32, #tpu.memory_space<vmem>>, vector<16x128xf32>
    tpu.vector_store %arg10[%c0_26, %c0_27], %42 {strides = array<i32>} : memref<16x128xf32, #tpu.memory_space<vmem>>, vector<16x128xf32>,
    return
  }
  func.func @transform_0(%arg0: i32) -> (i32, i32, i32) {
    %c0_i32 = arith.constant 0 : i32
    %c0_i32_0 = arith.constant 0 : i32
    %c0_i32_1 = arith.constant 0 : i32
    return %arg0, %c0_i32, %c0_i32_0 : i32, i32, i32
  }
  func.func @transform_1(%arg0: i32) -> (i32, i32) {
    %c0_i32 = arith.constant 0 : i32
    %c0_i32_0 = arith.constant 0 : i32
    %c0_i32_1 = arith.constant 0 : i32
    return %c0_i32, %c0_i32_0 : i32, i32
  }
  func.func @transform_2(%arg0: i32) -> (i32, i32) {
    %c0_i32 = arith.constant 0 : i32
    %c0_i32_0 = arith.constant 0 : i32
    %c0_i32_1 = arith.constant 0 : i32
    return %c0_i32, %c0_i32_0 : i32, i32
  }
  func.func @transform_3(%arg0: i32) -> (i32, i32) {
    %c0_i32 = arith.constant 0 : i32
    %c0_i32_0 = arith.constant 0 : i32
    %c0_i32_1 = arith.constant 0 : i32
    return %c0_i32, %c0_i32_0 : i32, i32
  }
  func.func @transform_4(%arg0: i32) -> (i32, i32) {
    %c0_i32 = arith.constant 0 : i32
    %c0_i32_0 = arith.constant 0 : i32
    %c0_i32_1 = arith.constant 0 : i32
    return %c0_i32, %c0_i32_0 : i32, i32
  }
  func.func @transform_5(%arg0: i32) -> (i32, i32) {
    %c0_i32 = arith.constant 0 : i32
    %c0_i32_0 = arith.constant 0 : i32
    %c0_i32_1 = arith.constant 0 : i32
    return %c0_i32, %c0_i32_0 : i32, i32
  }
  func.func @transform_6(%arg0: i32) -> (i32, i32) {
    %c0_i32 = arith.constant 0 : i32
    %c0_i32_0 = arith.constant 0 : i32
    %c0_i32_1 = arith.constant 0 : i32
    return %c0_i32, %c0_i32_0 : i32, i32
  }
  func.func @transform_7(%arg0: i32) -> (i32, i32) {
    %c0_i32 = arith.constant 0 : i32
    %c0_i32_0 = arith.constant 0 : i32
    %c0_i32_1 = arith.constant 0 : i32
    return %c0_i32, %c0_i32_0 : i32, i32
  }
  func.func @transform_8(%arg0: i32) -> (i32, i32) {
    %c0_i32 = arith.constant 0 : i32
    %c0_i32_0 = arith.constant 0 : i32
    %c0_i32_1 = arith.constant 0 : i32
    return %c0_i32, %c0_i32_0 : i32, i32
  }
  func.func @transform_9(%arg0: i32) -> (i32, i32) {
    %c0_i32 = arith.constant 0 : i32
    %c0_i32_0 = arith.constant 0 : i32
    return %arg0, %c0_i32 : i32, i32
  }
}

</mosaic_0001>

<llo_original>
// kernel: minet_lnl_forward.1
$region0: #{minet_lnl_forward.1}
  #allocation0 [shape = 'u32[]', space=smem, size = 0x4, offset = 0x4, fixed_abs, tag = 'smem constant byte address 0x4 - core index']
  #allocation1 [shape = 'u32[144,128]{1,0:T(1,128)}', space=vmem, size = 0x12000, scoped, tag = 'internal scratch']
  %s0 = inlined_call_operand.vmem [shape: f32[32,8,384], index: 0, kind: input, shape index: {}]
  %s1 = inlined_call_operand.vmem [shape: bf16[384,256], index: 1, kind: input, shape index: {}]
  %s2 = inlined_call_operand.vmem [shape: f32[1,256], index: 2, kind: input, shape index: {}]
  %s3 = inlined_call_operand.vmem [shape: bf16[256,128], index: 3, kind: input, shape index: {}]
  %s4 = inlined_call_operand.vmem [shape: f32[1,128], index: 4, kind: input, shape index: {}]
  %s5 = inlined_call_operand.vmem [shape: bf16[128,64], index: 5, kind: input, shape index: {}]
  %s6 = inlined_call_operand.vmem [shape: f32[1,64], index: 6, kind: input, shape index: {}]
  %s7 = inlined_call_operand.vmem [shape: bf16[64,128], index: 7, kind: input, shape index: {}]
  %s8 = inlined_call_operand.vmem [shape: f32[1,128], index: 8, kind: input, shape index: {}]
  %s9 = inlined_call_operand.vmem [shape: f32[32,128], index: 9, kind: output, shape index: {}]
  %s10 = sld [smem:[#allocation0]]
  $region69: #{minet_lnl_forward.1} parent=0
    _
  %s12 = ssub.s32 1, %s10
  %s13 = scalar_select 0, %s12, %s10
  loop: start=0, step=1, limit=4
  $region2: #{minet_lnl_forward.1} parent=0 // loop_pre_header
    _
  $region3: #{minet_lnl_forward.1} parent=0 // loop_header
    %s15 = sphi 0, %s19
    %p16 = scmp.ge.s32.totalorder %s15, 4
    %s25 = sphi 0, %s27
    %s28 = sphi 0, %s25
    %s29 = sphi 0, %s28
    %s45 = sphi 0, %s29
    %s49 = sphi 0, %s49
    %s51 = sphi 0, %s49
    %s52 = sphi 0, %s51
    %s66 = sphi 0, %s52
    %s70 = sphi 0, %s70
    %s72 = sphi 0, %s70
    %s73 = sphi 0, %s72
    %s87 = sphi 0, %s73
    %s91 = sphi 0, %s91
    %s93 = sphi 0, %s91
    %s94 = sphi 0, %s93
    %s108 = sphi 0, %s94
    %s112 = sphi 0, %s112
    %s114 = sphi 0, %s112
    %s115 = sphi 0, %s114
    %s129 = sphi 0, %s115
    %s133 = sphi 0, %s133
    %s135 = sphi 0, %s133
    %s136 = sphi 0, %s135
    %s150 = sphi 0, %s136
    %s154 = sphi 0, %s154
    %s156 = sphi 0, %s154
    %s157 = sphi 0, %s156
    %s171 = sphi 0, %s157
    %s175 = sphi 0, %s175
    %s177 = sphi 0, %s175
    %s178 = sphi 0, %s177
    %s192 = sphi 0, %s178
    %s196 = sphi 0, %s196
    %s198 = sphi 0, %s196
    %s199 = sphi 0, %s198
    %s213 = sphi 0, %s199
    %s219 = sphi 0, %s221
    %s222 = sphi 0, %s219
    %s223 = sphi 0, %s222
    %s239 = sphi 0, %s223
  $region4: #{minet_lnl_forward.1} parent=0 // loop_header_branch
    %18 = sbr.rel (%p16) target = $region8
  $region5: #{minet_lnl_forward.1} parent=0 // loop_body
    %s20 = ssub.s32 %s15, 1
    %s21 = ssub.s32 %s15, 2
    %s22 = sadd.s32 %s15, 1
    %s23 = ssub.s32 %s15, %s22
    %p24 = scmp.eq.s32.totalorder %s23, 0
    %s26 = sadd.s32 %s25, 1
    %s27 = scalar_select %p24, %s25, %s26
    %p30 = pneg %p24
    %p31 = scmp.eq.s32.totalorder %s15, 1
    %p32 = por %p30, %p31
    %p33 = scmp.ne.s32.totalorder %s25, %s28
    %p34 = scmp.eq.s32.totalorder %s15, 0
    %p35 = por %p33, %p34
    %p36 = scmp.ne.s32.totalorder %s25, %s28
    %p37 = scmp.eq.s32.totalorder %s20, 1
    %p38 = por %p36, %p37
    %p39 = scmp.ne.s32.totalorder %s28, %s29
    %p40 = scmp.eq.s32.totalorder %s20, 0
    %p41 = por %p39, %p40
    %p42 = scmp.ne.s32.totalorder %s28, %s29
    %p43 = scmp.eq.s32.totalorder %s21, 1
    %p44 = por %p42, %p43
    %p46 = scmp.ne.s32.totalorder %s29, %s45
    %p47 = scmp.eq.s32.totalorder %s21, 0
    %p48 = por %p46, %p47
    %s50 = sadd.s32 %s49, 1
    %p53 = scmp.eq.s32.totalorder %s15, 1
    %p54 = scmp.ne.s32.totalorder %s49, %s51
    %p55 = scmp.eq.s32.totalorder %s15, 0
    %p56 = por %p54, %p55
    %p57 = scmp.ne.s32.totalorder %s49, %s51
    %p58 = scmp.eq.s32.totalorder %s20, 1
    %p59 = por %p57, %p58
    %p60 = scmp.ne.s32.totalorder %s51, %s52
    %p61 = scmp.eq.s32.totalorder %s20, 0
    %p62 = por %p60, %p61
    %p63 = scmp.ne.s32.totalorder %s51, %s52
    %p64 = scmp.eq.s32.totalorder %s21, 1
    %p65 = por %p63, %p64
    %p67 = scmp.ne.s32.totalorder %s52, %s66
    %p68 = scmp.eq.s32.totalorder %s21, 0
    %p69 = por %p67, %p68
    %s71 = sadd.s32 %s70, 1
    %p74 = scmp.eq.s32.totalorder %s15, 1
    %p75 = scmp.ne.s32.totalorder %s70, %s72
    %p76 = scmp.eq.s32.totalorder %s15, 0
    %p77 = por %p75, %p76
    %p78 = scmp.ne.s32.totalorder %s70, %s72
    %p79 = scmp.eq.s32.totalorder %s20, 1
    %p80 = por %p78, %p79
    %p81 = scmp.ne.s32.totalorder %s72, %s73
    %p82 = scmp.eq.s32.totalorder %s20, 0
    %p83 = por %p81, %p82
    %p84 = scmp.ne.s32.totalorder %s72, %s73
    %p85 = scmp.eq.s32.totalorder %s21, 1
    %p86 = por %p84, %p85
    %p88 = scmp.ne.s32.totalorder %s73, %s87
    %p89 = scmp.eq.s32.totalorder %s21, 0
    %p90 = por %p88, %p89
    %s92 = sadd.s32 %s91, 1
    %p95 = scmp.eq.s32.totalorder %s15, 1
    %p96 = scmp.ne.s32.totalorder %s91, %s93
    %p97 = scmp.eq.s32.totalorder %s15, 0
    %p98 = por %p96, %p97
    %p99 = scmp.ne.s32.totalorder %s91, %s93
    %p100 = scmp.eq.s32.totalorder %s20, 1
    %p101 = por %p99, %p100
    %p102 = scmp.ne.s32.totalorder %s93, %s94
    %p103 = scmp.eq.s32.totalorder %s20, 0
    %p104 = por %p102, %p103
    %p105 = scmp.ne.s32.totalorder %s93, %s94
    %p106 = scmp.eq.s32.totalorder %s21, 1
    %p107 = por %p105, %p106
    %p109 = scmp.ne.s32.totalorder %s94, %s108
    %p110 = scmp.eq.s32.totalorder %s21, 0
    %p111 = por %p109, %p110
    %s113 = sadd.s32 %s112, 1
    %p116 = scmp.eq.s32.totalorder %s15, 1
    %p117 = scmp.ne.s32.totalorder %s112, %s114
    %p118 = scmp.eq.s32.totalorder %s15, 0
    %p119 = por %p117, %p118
    %p120 = scmp.ne.s32.totalorder %s112, %s114
    %p121 = scmp.eq.s32.totalorder %s20, 1
    %p122 = por %p120, %p121
    %p123 = scmp.ne.s32.totalorder %s114, %s115
    %p124 = scmp.eq.s32.totalorder %s20, 0
    %p125 = por %p123, %p124
    %p126 = scmp.ne.s32.totalorder %s114, %s115
    %p127 = scmp.eq.s32.totalorder %s21, 1
    %p128 = por %p126, %p127
    %p130 = scmp.ne.s32.totalorder %s115, %s129
    %p131 = scmp.eq.s32.totalorder %s21, 0
    %p132 = por %p130, %p131
    %s134 = sadd.s32 %s133, 1
    %p137 = scmp.eq.s32.totalorder %s15, 1
    %p138 = scmp.ne.s32.totalorder %s133, %s135
    %p139 = scmp.eq.s32.totalorder %s15, 0
    %p140 = por %p138, %p139
    %p141 = scmp.ne.s32.totalorder %s133, %s135
    %p142 = scmp.eq.s32.totalorder %s20, 1
    %p143 = por %p141, %p142
    %p144 = scmp.ne.s32.totalorder %s135, %s136
    %p145 = scmp.eq.s32.totalorder %s20, 0
    %p146 = por %p144, %p145
    %p147 = scmp.ne.s32.totalorder %s135, %s136
    %p148 = scmp.eq.s32.totalorder %s21, 1
    %p149 = por %p147, %p148
    %p151 = scmp.ne.s32.totalorder %s136, %s150
    %p152 = scmp.eq.s32.totalorder %s21, 0
    %p153 = por %p151, %p152
    %s155 = sadd.s32 %s154, 1
    %p158 = scmp.eq.s32.totalorder %s15, 1
    %p159 = scmp.ne.s32.totalorder %s154, %s156
    %p160 = scmp.eq.s32.totalorder %s15, 0
    %p161 = por %p159, %p160
    %p162 = scmp.ne.s32.totalorder %s154, %s156
    %p163 = scmp.eq.s32.totalorder %s20, 1
    %p164 = por %p162, %p163
    %p165 = scmp.ne.s32.totalorder %s156, %s157
    %p166 = scmp.eq.s32.totalorder %s20, 0
    %p167 = por %p165, %p166
    %p168 = scmp.ne.s32.totalorder %s156, %s157
    %p169 = scmp.eq.s32.totalorder %s21, 1
    %p170 = por %p168, %p169
    %p172 = scmp.ne.s32.totalorder %s157, %s171
    %p173 = scmp.eq.s32.totalorder %s21, 0
    %p174 = por %p172, %p173
    %s176 = sadd.s32 %s175, 1
    %p179 = scmp.eq.s32.totalorder %s15, 1
    %p180 = scmp.ne.s32.totalorder %s175, %s177
    %p181 = scmp.eq.s32.totalorder %s15, 0
    %p182 = por %p180, %p181
    %p183 = scmp.ne.s32.totalorder %s175, %s177
    %p184 = scmp.eq.s32.totalorder %s20, 1
    %p185 = por %p183, %p184
    %p186 = scmp.ne.s32.totalorder %s177, %s178
    %p187 = scmp.eq.s32.totalorder %s20, 0
    %p188 = por %p186, %p187
    %p189 = scmp.ne.s32.totalorder %s177, %s178
    %p190 = scmp.eq.s32.totalorder %s21, 1
    %p191 = por %p189, %p190
    %p193 = scmp.ne.s32.totalorder %s178, %s192
    %p194 = scmp.eq.s32.totalorder %s21, 0
    %p195 = por %p193, %p194
    %s197 = sadd.s32 %s196, 1
    %p200 = scmp.eq.s32.totalorder %s15, 1
    %p201 = scmp.ne.s32.totalorder %s196, %s198
    %p202 = scmp.eq.s32.totalorder %s15, 0
    %p203 = por %p201, %p202
    %p204 = scmp.ne.s32.totalorder %s196, %s198
    %p205 = scmp.eq.s32.totalorder %s20, 1
    %p206 = por %p204, %p205
    %p207 = scmp.ne.s32.totalorder %s198, %s199
    %p208 = scmp.eq.s32.totalorder %s20, 0
    %p209 = por %p207, %p208
    %p210 = scmp.ne.s32.totalorder %s198, %s199
    %p211 = scmp.eq.s32.totalorder %s21, 1
    %p212 = por %p210, %p211
    %p214 = scmp.ne.s32.totalorder %s199, %s213
    %p215 = scmp.eq.s32.totalorder %s21, 0
    %p216 = por %p214, %p215
    %s217 = ssub.s32 %s15, %s22
    %p218 = scmp.eq.s32.totalorder %s217, 0
    %s220 = sadd.s32 %s219, 1
    %s221 = scalar_select %p218, %s219, %s220
    %p224 = pneg %p218
    %p225 = scmp.eq.s32.totalorder %s15, 1
    %p226 = por %p224, %p225
    %p227 = scmp.ne.s32.totalorder %s219, %s222
    %p228 = scmp.eq.s32.totalorder %s15, 0
    %p229 = por %p227, %p228
    %p230 = scmp.ne.s32.totalorder %s219, %s222
    %p231 = scmp.eq.s32.totalorder %s20, 1
    %p232 = por %p230, %p231
    %p233 = scmp.ne.s32.totalorder %s222, %s223
    %p234 = scmp.eq.s32.totalorder %s20, 0
    %p235 = por %p233, %p234
    %p236 = scmp.ne.s32.totalorder %s222, %s223
    %p237 = scmp.eq.s32.totalorder %s21, 1
    %p238 = por %p236, %p237
    %p240 = scmp.ne.s32.totalorder %s223, %s239
    %p241 = scmp.eq.s32.totalorder %s21, 0
    %p242 = por %p240, %p241
    %p243 = scmp.le.s32.totalorder 1, %s15
    %p244 = scmp.lt.s32.totalorder %s15, 3
    %p245 = pnand %p243, %p244
    %p246 = pneg %p245
    // Predicated region
    $region9: #{minet_lnl_forward.1} parent=5 // pred_check
      _
    $region10: #{minet_lnl_forward.1} parent=5 // pred_check_branch
      %248 = sbr.rel (%p245) target = $region12
    $region11: #{minet_lnl_forward.1} parent=5 // pred_region
      %s249 = ssub.s32 %s15, 1
      // Predicated region
      $region13: #{minet_lnl_forward.1} parent=11 // pred_check
        %p250 = pneg %p62
      $region14: #{minet_lnl_forward.1} parent=11 // pred_check_branch
        %252 = sbr.rel (%p250) target = $region16
      $region15: #{minet_lnl_forward.1} parent=11 // pred_region
        _
      $region16: #{minet_lnl_forward.1} parent=11 // pred_fallthru
        _
      // Predicated region
      $region17: #{minet_lnl_forward.1} parent=11 // pred_check
        %p253 = pneg %p83
      $region18: #{minet_lnl_forward.1} parent=11 // pred_check_branch
        %255 = sbr.rel (%p253) target = $region20
      $region19: #{minet_lnl_forward.1} parent=11 // pred_region
        _
      $region20: #{minet_lnl_forward.1} parent=11 // pred_fallthru
        _
      // Predicated region
      $region21: #{minet_lnl_forward.1} parent=11 // pred_check
        %p256 = pneg %p104
      $region22: #{minet_lnl_forward.1} parent=11 // pred_check_branch
        %258 = sbr.rel (%p256) target = $region24
      $region23: #{minet_lnl_forward.1} parent=11 // pred_region
        _
      $region24: #{minet_lnl_forward.1} parent=11 // pred_fallthru
        _
      // Predicated region
      $region25: #{minet_lnl_forward.1} parent=11 // pred_check
        %p259 = pneg %p125
      $region26: #{minet_lnl_forward.1} parent=11 // pred_check_branch
        %261 = sbr.rel (%p259) target = $region28
      $region27: #{minet_lnl_forward.1} parent=11 // pred_region
        _
      $region28: #{minet_lnl_forward.1} parent=11 // pred_fallthru
        _
      // Predicated region
      $region29: #{minet_lnl_forward.1} parent=11 // pred_check
        %p262 = pneg %p146
      $region30: #{minet_lnl_forward.1} parent=11 // pred_check_branch
        %264 = sbr.rel (%p262) target = $region32
      $region31: #{minet_lnl_forward.1} parent=11 // pred_region
        _
      $region32: #{minet_lnl_forward.1} parent=11 // pred_fallthru
        _
      // Predicated region
      $region33: #{minet_lnl_forward.1} parent=11 // pred_check
        %p265 = pneg %p167
      $region34: #{minet_lnl_forward.1} parent=11 // pred_check_branch
        %267 = sbr.rel (%p265) target = $region36
      $region35: #{minet_lnl_forward.1} parent=11 // pred_region
        _
      $region36: #{minet_lnl_forward.1} parent=11 // pred_fallthru
        _
      // Predicated region
      $region37: #{minet_lnl_forward.1} parent=11 // pred_check
        %p268 = pneg %p188
      $region38: #{minet_lnl_forward.1} parent=11 // pred_check_branch
        %270 = sbr.rel (%p268) target = $region40
      $region39: #{minet_lnl_forward.1} parent=11 // pred_region
        _
      $region40: #{minet_lnl_forward.1} parent=11 // pred_fallthru
        _
      // Predicated region
      $region41: #{minet_lnl_forward.1} parent=11 // pred_check
        %p271 = pneg %p209
      $region42: #{minet_lnl_forward.1} parent=11 // pred_check_branch
        %273 = sbr.rel (%p271) target = $region44
      $region43: #{minet_lnl_forward.1} parent=11 // pred_region
        _
      $region44: #{minet_lnl_forward.1} parent=11 // pred_fallthru
        _
    $region12: #{minet_lnl_forward.1} parent=5 // pred_fallthru
      _
    %p274 = scmp.lt.s32.totalorder %s15, 2
    // Predicated region
    $region45: #{minet_lnl_forward.1} parent=5 // pred_check
      %p275 = pneg %p274
    $region46: #{minet_lnl_forward.1} parent=5 // pred_check_branch
      %277 = sbr.rel (%p275) target = $region48
    $region47: #{minet_lnl_forward.1} parent=5 // pred_region
      // Predicated region
      $region49: #{minet_lnl_forward.1} parent=47 // pred_check
        %p278 = pneg %p35
      $region50: #{minet_lnl_forward.1} parent=47 // pred_check_branch
        %280 = sbr.rel (%p278) target = $region52
      $region51: #{minet_lnl_forward.1} parent=47 // pred_region
        %s281 = smul.u32 16, %s15
        %p282 = scmp.lt.s32.totalorder %s281, 31
        %s283 = scalar_select %p282, %s281, 31
        %s284 = smul.addr %s283, 3
        %s285 = smul.addr %s284, 8
        %s286 = scalar_lea.vmem %s0, %s285
        %s287 = smul.u32 16, %s15
      $region52: #{minet_lnl_forward.1} parent=47 // pred_fallthru
        _
    $region48: #{minet_lnl_forward.1} parent=5 // pred_fallthru
      _
    %p288 = scmp.le.s32.totalorder 1, %s15
    %p289 = scmp.lt.s32.totalorder %s15, 3
    %p290 = pnand %p288, %p289
    %p291 = pneg %p290
    // Predicated region
    $region53: #{minet_lnl_forward.1} parent=5 // pred_check
      _
    $region54: #{minet_lnl_forward.1} parent=5 // pred_check_branch
      %293 = sbr.rel (%p290) target = $region56
    $region55: #{minet_lnl_forward.1} parent=5 // pred_region
      %s294 = ssub.s32 %s15, 1
      %s295 = smul.u32 16, %s20
      %p296 = scmp.lt.s32.totalorder %s295, 31
      %s297 = scalar_select %p296, %s295, 31
      %s298 = smul.addr %s297, 3
      %s299 = smul.addr %s298, 8
      %s300 = scalar_lea.vmem %s0, %s299
      %p301 = pneg %p41
      %p302 = pneg %p38
      %p303 = pneg %p62
      %p304 = pneg %p59
      %p305 = pneg %p83
      %p306 = pneg %p80
      %p307 = pneg %p104
      %p308 = pneg %p101
      %p309 = pneg %p125
      %p310 = pneg %p122
      %p311 = pneg %p146
      %p312 = pneg %p143
      %p313 = pneg %p167
      %p314 = pneg %p164
      %p315 = pneg %p188
      %p316 = pneg %p185
      %p317 = pneg %p209
      %p318 = pneg %p206
      %p319 = pneg %p235
      %p320 = pneg %p232
      %s321 = smul.u32 2, %s20
      %p322 = scmp.lt.s32.totalorder %s321, 3
      %s323 = scalar_select %p322, %s321, 3
      %s324 = smul.addr %s323, 8
      %s325 = scalar_lea.vmem %s9, %s324
      %s326 = smul.u32 16, %s20
      %p327 = scmp.lt.s32.totalorder %s326, 31
      %s328 = scalar_select %p327, %s326, 31
      %s329 = smul.addr %s328, 3
      %s330 = smul.addr %s329, 8
      %s331 = scalar_lea.vmem %s0, %s330
      %s332 = smul.u32 16, %s20
      %s333 = smul.u32 2, %s20
      %p334 = scmp.lt.s32.totalorder %s333, 3
      %s335 = scalar_select %p334, %s333, 3
      %s336 = smul.addr %s335, 8
      %s337 = scalar_lea.vmem %s9, %s336
      %s338 = smul.u32 2, %s20
      %v340 = vld [vmem:[%s331] sm:$0xff]
      %v341 = vld [vmem:[%s331 + $0x8] sm:$0xff]
      %v342 = vld [vmem:[%s331 + $0x10] sm:$0xff]
      %v343 = vld [vmem:[%s331 + $0x18] sm:$0xff]
      %v344 = vld [vmem:[%s331 + $0x20] sm:$0xff]
      %v345 = vld [vmem:[%s331 + $0x28] sm:$0xff]
      %v346 = vld [vmem:[%s331 + $0x30] sm:$0xff]
      %v347 = vld [vmem:[%s331 + $0x38] sm:$0xff]
      %v348 = vld [vmem:[%s331 + $0x40] sm:$0xff]
      %v349 = vld [vmem:[%s331 + $0x48] sm:$0xff]
      %v350 = vld [vmem:[%s331 + $0x50] sm:$0xff]
      %v351 = vld [vmem:[%s331 + $0x58] sm:$0xff]
      %v352 = vld [vmem:[%s331 + $0x60] sm:$0xff]
      %v353 = vld [vmem:[%s331 + $0x68] sm:$0xff]
      %v354 = vld [vmem:[%s331 + $0x70] sm:$0xff]
      %v355 = vld [vmem:[%s331 + $0x78] sm:$0xff]
      %v356 = vld [vmem:[%s331 + $0x80] sm:$0xff]
      %v357 = vld [vmem:[%s331 + $0x88] sm:$0xff]
      %v358 = vld [vmem:[%s331 + $0x90] sm:$0xff]
      %v359 = vld [vmem:[%s331 + $0x98] sm:$0xff]
      %v360 = vld [vmem:[%s331 + $0xa0] sm:$0xff]
      %v361 = vld [vmem:[%s331 + $0xa8] sm:$0xff]
      %v362 = vld [vmem:[%s331 + $0xb0] sm:$0xff]
      %v363 = vld [vmem:[%s331 + $0xb8] sm:$0xff]
      %v364 = vld [vmem:[%s331 + $0xc0] sm:$0xff]
      %v365 = vld [vmem:[%s331 + $0xc8] sm:$0xff]
      %v366 = vld [vmem:[%s331 + $0xd0] sm:$0xff]
      %v367 = vld [vmem:[%s331 + $0xd8] sm:$0xff]
      %v368 = vld [vmem:[%s331 + $0xe0] sm:$0xff]
      %v369 = vld [vmem:[%s331 + $0xe8] sm:$0xff]
      %v370 = vld [vmem:[%s331 + $0xf0] sm:$0xff]
      %v371 = vld [vmem:[%s331 + $0xf8] sm:$0xff]
      %v372 = vld [vmem:[%s331 + $0x100] sm:$0xff]
      %v373 = vld [vmem:[%s331 + $0x108] sm:$0xff]
      %v374 = vld [vmem:[%s331 + $0x110] sm:$0xff]
      %v375 = vld [vmem:[%s331 + $0x118] sm:$0xff]
      %v376 = vld [vmem:[%s331 + $0x120] sm:$0xff]
      %v377 = vld [vmem:[%s331 + $0x128] sm:$0xff]
      %v378 = vld [vmem:[%s331 + $0x130] sm:$0xff]
      %v379 = vld [vmem:[%s331 + $0x138] sm:$0xff]
      %v380 = vld [vmem:[%s331 + $0x140] sm:$0xff]
      %v381 = vld [vmem:[%s331 + $0x148] sm:$0xff]
      %v382 = vld [vmem:[%s331 + $0x150] sm:$0xff]
      %v383 = vld [vmem:[%s331 + $0x158] sm:$0xff]
      %v384 = vld [vmem:[%s331 + $0x160] sm:$0xff]
      %v385 = vld [vmem:[%s331 + $0x168] sm:$0xff]
      %v386 = vld [vmem:[%s331 + $0x170] sm:$0xff]
      %v387 = vld [vmem:[%s331 + $0x178] sm:$0xff]
      %v388 = vpack.c.bf16 %v343, %v340
      %v389 = vpack.c.bf16 %v344, %v341
      %v390 = vpack.c.bf16 %v345, %v342
      %v391 = vpack.c.bf16 %v349, %v346
      %v392 = vpack.c.bf16 %v350, %v347
      %v393 = vpack.c.bf16 %v351, %v348
      %v394 = vpack.c.bf16 %v355, %v352
      %v395 = vpack.c.bf16 %v356, %v353
      %v396 = vpack.c.bf16 %v357, %v354
      %v397 = vpack.c.bf16 %v361, %v358
      %v398 = vpack.c.bf16 %v362, %v359
      %v399 = vpack.c.bf16 %v363, %v360
      %v400 = vpack.c.bf16 %v367, %v364
      %v401 = vpack.c.bf16 %v368, %v365
      %v402 = vpack.c.bf16 %v369, %v366
      %v403 = vpack.c.bf16 %v373, %v370
      %v404 = vpack.c.bf16 %v374, %v371
      %v405 = vpack.c.bf16 %v375, %v372
      %v406 = vpack.c.bf16 %v379, %v376
      %v407 = vpack.c.bf16 %v380, %v377
      %v408 = vpack.c.bf16 %v381, %v378
      %v409 = vpack.c.bf16 %v385, %v382
      %v410 = vpack.c.bf16 %v386, %v383
      %v411 = vpack.c.bf16 %v387, %v384
      %v412 = vld [vmem:[%s1] sm:$0xff]
      %v413 = vld [vmem:[%s1 + $0x8] sm:$0xff]
      %v414 = vld [vmem:[%s1 + $0x10] sm:$0xff]
      %v415 = vld [vmem:[%s1 + $0x18] sm:$0xff]
      %v416 = vld [vmem:[%s1 + $0x20] sm:$0xff]
      %v417 = vld [vmem:[%s1 + $0x28] sm:$0xff]
      %v418 = vld [vmem:[%s1 + $0x30] sm:$0xff]
      %v419 = vld [vmem:[%s1 + $0x38] sm:$0xff]
      %v420 = vld [vmem:[%s1 + $0x40] sm:$0xff]
      %v421 = vld [vmem:[%s1 + $0x48] sm:$0xff]
      %v422 = vld [vmem:[%s1 + $0x50] sm:$0xff]
      %v423 = vld [vmem:[%s1 + $0x58] sm:$0xff]
      %v424 = vld [vmem:[%s1 + $0x60] sm:$0xff]
      %v425 = vld [vmem:[%s1 + $0x68] sm:$0xff]
      %v426 = vld [vmem:[%s1 + $0x70] sm:$0xff]
      %v427 = vld [vmem:[%s1 + $0x78] sm:$0xff]
      %v428 = vld [vmem:[%s1 + $0x80] sm:$0xff]
      %v429 = vld [vmem:[%s1 + $0x88] sm:$0xff]
      %v430 = vld [vmem:[%s1 + $0x90] sm:$0xff]
      %v431 = vld [vmem:[%s1 + $0x98] sm:$0xff]
      %v432 = vld [vmem:[%s1 + $0xa0] sm:$0xff]
      %v433 = vld [vmem:[%s1 + $0xa8] sm:$0xff]
      %v434 = vld [vmem:[%s1 + $0xb0] sm:$0xff]
      %v435 = vld [vmem:[%s1 + $0xb8] sm:$0xff]
      %v436 = vld [vmem:[%s1 + $0xc0] sm:$0xff]
      %v437 = vld [vmem:[%s1 + $0xc8] sm:$0xff]
      %v438 = vld [vmem:[%s1 + $0xd0] sm:$0xff]
      %v439 = vld [vmem:[%s1 + $0xd8] sm:$0xff]
      %v440 = vld [vmem:[%s1 + $0xe0] sm:$0xff]
      %v441 = vld [vmem:[%s1 + $0xe8] sm:$0xff]
      %v442 = vld [vmem:[%s1 + $0xf0] sm:$0xff]
      %v443 = vld [vmem:[%s1 + $0xf8] sm:$0xff]
      %v444 = vld [vmem:[%s1 + $0x100] sm:$0xff]
      %v445 = vld [vmem:[%s1 + $0x108] sm:$0xff]
      %v446 = vld [vmem:[%s1 + $0x110] sm:$0xff]
      %v447 = vld [vmem:[%s1 + $0x118] sm:$0xff]
      %v448 = vld [vmem:[%s1 + $0x120] sm:$0xff]
      %v449 = vld [vmem:[%s1 + $0x128] sm:$0xff]
      %v450 = vld [vmem:[%s1 + $0x130] sm:$0xff]
      %v451 = vld [vmem:[%s1 + $0x138] sm:$0xff]
      %v452 = vld [vmem:[%s1 + $0x140] sm:$0xff]
      %v453 = vld [vmem:[%s1 + $0x148] sm:$0xff]
      %v454 = vld [vmem:[%s1 + $0x150] sm:$0xff]
      %v455 = vld [vmem:[%s1 + $0x158] sm:$0xff]
      %v456 = vld [vmem:[%s1 + $0x160] sm:$0xff]
      %v457 = vld [vmem:[%s1 + $0x168] sm:$0xff]
      %v458 = vld [vmem:[%s1 + $0x170] sm:$0xff]
      %v459 = vld [vmem:[%s1 + $0x178] sm:$0xff]
      %v460 = vld [vmem:[%s2] sm:$0x3]
      %v462 = vlaneseq
      %v463 = vshrl.u32 %v462, 7
      %v464 = vsub.s32 0, %v463
      %v465 = vrot.slane %v460, %v464
      %v466 = vlaneseq
      %v467 = vshrl.u32 %v466, 7
      %v468 = vsub.s32 1, %v467
      %v469 = vrot.slane %v460, %v468
      %v520 = vunpack.c.l.b16 %v412
      %v521 = vunpack.c.h.b16 %v412
      %v522 = vunpack.c.l.b16 %v413
      %v523 = vunpack.c.h.b16 %v413
      %v524 = vunpack.c.l.b16 %v414
      %v525 = vunpack.c.h.b16 %v414
      %v526 = vunpack.c.l.b16 %v415
      %v527 = vunpack.c.h.b16 %v415
      %v528 = vunpack.c.l.b16 %v416
      %v529 = vunpack.c.h.b16 %v416
      %v530 = vunpack.c.l.b16 %v417
      %v531 = vunpack.c.h.b16 %v417
      %v532 = vunpack.c.l.b16 %v418
      %v533 = vunpack.c.h.b16 %v418
      %v534 = vunpack.c.l.b16 %v419
      %v535 = vunpack.c.h.b16 %v419
      %v536 = vunpack.c.l.b16 %v420
      %v537 = vunpack.c.h.b16 %v420
      %v538 = vunpack.c.l.b16 %v421
      %v539 = vunpack.c.h.b16 %v421
      %v540 = vunpack.c.l.b16 %v422
      %v541 = vunpack.c.h.b16 %v422
      %v542 = vunpack.c.l.b16 %v423
      %v543 = vunpack.c.h.b16 %v423
      %v544 = vunpack.c.l.b16 %v424
      %v545 = vunpack.c.h.b16 %v424
      %v546 = vunpack.c.l.b16 %v425
      %v547 = vunpack.c.h.b16 %v425
      %v548 = vunpack.c.l.b16 %v426
      %v549 = vunpack.c.h.b16 %v426
      %v550 = vunpack.c.l.b16 %v427
      %v551 = vunpack.c.h.b16 %v427
      %v552 = vunpack.c.l.b16 %v428
      %v553 = vunpack.c.h.b16 %v428
      %v554 = vunpack.c.l.b16 %v429
      %v555 = vunpack.c.h.b16 %v429
      %v556 = vunpack.c.l.b16 %v430
      %v557 = vunpack.c.h.b16 %v430
      %v558 = vunpack.c.l.b16 %v431
      %v559 = vunpack.c.h.b16 %v431
      %v560 = vunpack.c.l.b16 %v432
      %v561 = vunpack.c.h.b16 %v432
      %v562 = vunpack.c.l.b16 %v433
      %v563 = vunpack.c.h.b16 %v433
      %v564 = vunpack.c.l.b16 %v434
      %v565 = vunpack.c.h.b16 %v434
      %v566 = vunpack.c.l.b16 %v435
      %v567 = vunpack.c.h.b16 %v435
      %v568 = vunpack.c.l.b16 %v436
      %v569 = vunpack.c.h.b16 %v436
      %v570 = vunpack.c.l.b16 %v437
      %v571 = vunpack.c.h.b16 %v437
      %v572 = vunpack.c.l.b16 %v438
      %v573 = vunpack.c.h.b16 %v438
      %v574 = vunpack.c.l.b16 %v439
      %v575 = vunpack.c.h.b16 %v439
      %v576 = vunpack.c.l.b16 %v440
      %v577 = vunpack.c.h.b16 %v440
      %v578 = vunpack.c.l.b16 %v441
      %v579 = vunpack.c.h.b16 %v441
      %v580 = vunpack.c.l.b16 %v442
      %v581 = vunpack.c.h.b16 %v442
      %v582 = vunpack.c.l.b16 %v443
      %v583 = vunpack.c.h.b16 %v443
      %v584 = vunpack.c.l.b16 %v444
      %v585 = vunpack.c.h.b16 %v444
      %v586 = vunpack.c.l.b16 %v445
      %v587 = vunpack.c.h.b16 %v445
      %v588 = vunpack.c.l.b16 %v446
      %v589 = vunpack.c.h.b16 %v446
      %v590 = vunpack.c.l.b16 %v447
      %v591 = vunpack.c.h.b16 %v447
      %v592 = vunpack.c.l.b16 %v448
      %v593 = vunpack.c.h.b16 %v448
      %v594 = vunpack.c.l.b16 %v449
      %v595 = vunpack.c.h.b16 %v449
      %v596 = vunpack.c.l.b16 %v450
      %v597 = vunpack.c.h.b16 %v450
      %v598 = vunpack.c.l.b16 %v451
      %v599 = vunpack.c.h.b16 %v451
      %v600 = vunpack.c.l.b16 %v452
      %v601 = vunpack.c.h.b16 %v452
      %v602 = vunpack.c.l.b16 %v453
      %v603 = vunpack.c.h.b16 %v453
      %v604 = vunpack.c.l.b16 %v454
      %v605 = vunpack.c.h.b16 %v454
      %v606 = vunpack.c.l.b16 %v455
      %v607 = vunpack.c.h.b16 %v455
      %v608 = vunpack.c.l.b16 %v456
      %v609 = vunpack.c.h.b16 %v456
      %v610 = vunpack.c.l.b16 %v457
      %v611 = vunpack.c.h.b16 %v457
      %v612 = vunpack.c.l.b16 %v458
      %v613 = vunpack.c.h.b16 %v458
      %v614 = vunpack.c.l.b16 %v459
      %v615 = vunpack.c.h.b16 %v459
      %v616 = vpack.c.b16 %v522, %v520
      %v617 = vpack.c.b16 %v523, %v521
      %v618 = vpack.c.b16 %v526, %v524
      %v619 = vpack.c.b16 %v527, %v525
      %v620 = vpack.c.b16 %v530, %v528
      %v621 = vpack.c.b16 %v531, %v529
      %v622 = vpack.c.b16 %v534, %v532
      %v623 = vpack.c.b16 %v535, %v533
      %v624 = vpack.c.b16 %v538, %v536
      %v625 = vpack.c.b16 %v539, %v537
      %v626 = vpack.c.b16 %v542, %v540
      %v627 = vpack.c.b16 %v543, %v541
      %v628 = vpack.c.b16 %v546, %v544
      %v629 = vpack.c.b16 %v547, %v545
      %v630 = vpack.c.b16 %v550, %v548
      %v631 = vpack.c.b16 %v551, %v549
      %v632 = vpack.c.b16 %v554, %v552
      %v633 = vpack.c.b16 %v555, %v553
      %v634 = vpack.c.b16 %v558, %v556
      %v635 = vpack.c.b16 %v559, %v557
      %v636 = vpack.c.b16 %v562, %v560
      %v637 = vpack.c.b16 %v563, %v561
      %v638 = vpack.c.b16 %v566, %v564
      %v639 = vpack.c.b16 %v567, %v565
      %v640 = vpack.c.b16 %v570, %v568
      %v641 = vpack.c.b16 %v571, %v569
      %v642 = vpack.c.b16 %v574, %v572
      %v643 = vpack.c.b16 %v575, %v573
      %v644 = vpack.c.b16 %v578, %v576
      %v645 = vpack.c.b16 %v579, %v577
      %v646 = vpack.c.b16 %v582, %v580
      %v647 = vpack.c.b16 %v583, %v581
      %v648 = vpack.c.b16 %v586, %v584
      %v649 = vpack.c.b16 %v587, %v585
      %v650 = vpack.c.b16 %v590, %v588
      %v651 = vpack.c.b16 %v591, %v589
      %v652 = vpack.c.b16 %v594, %v592
      %v653 = vpack.c.b16 %v595, %v593
      %v654 = vpack.c.b16 %v598, %v596
      %v655 = vpack.c.b16 %v599, %v597
      %v656 = vpack.c.b16 %v602, %v600
      %v657 = vpack.c.b16 %v603, %v601
      %v658 = vpack.c.b16 %v606, %v604
      %v659 = vpack.c.b16 %v607, %v605
      %v660 = vpack.c.b16 %v610, %v608
      %v661 = vpack.c.b16 %v611, %v609
      %v662 = vpack.c.b16 %v614, %v612
      %v663 = vpack.c.b16 %v615, %v613
      %712 = vmatprep.subr.bf16.mxu0 %v617
      %713 = vmatpush1.bf16.msra.mxu0 %v616
      %714 = vmatprep.subr.bf16.mxu0 %v619
      %715 = vmatpush1.bf16.msra.mxu0 %v618
      %716 = vmatprep.subr.bf16.mxu0 %v621
      %717 = vmatpush1.bf16.msra.mxu0 %v620
      %718 = vmatprep.subr.bf16.mxu0 %v623
      %719 = vmatpush1.bf16.msra.mxu0 %v622
      %720 = vmatprep.subr.bf16.mxu0 %v625
      %721 = vmatpush1.bf16.msra.mxu0 %v624
      %722 = vmatprep.subr.bf16.mxu0 %v627
      %723 = vmatpush1.bf16.msra.mxu0 %v626
      %724 = vmatprep.subr.bf16.mxu0 %v629
      %725 = vmatpush1.bf16.msra.mxu0 %v628
      %726 = vmatprep.subr.bf16.mxu0 %v631
      %727 = vmatpush1.bf16.msra.mxu0 %v630
      %728 = vmatprep.subr.bf16.mxu0 %v633
      %729 = vmatpush1.bf16.msra.mxu0 %v632
      %730 = vmatprep.subr.bf16.mxu0 %v635
      %731 = vmatpush1.bf16.msra.mxu0 %v634
      %732 = vmatprep.subr.bf16.mxu0 %v637
      %733 = vmatpush1.bf16.msra.mxu0 %v636
      %734 = vmatprep.subr.bf16.mxu0 %v639
      %735 = vmatpush1.bf16.msra.mxu0 %v638
      %736 = vmatprep.subr.bf16.mxu0 %v641
      %737 = vmatpush1.bf16.msra.mxu0 %v640
      %738 = vmatprep.subr.bf16.mxu0 %v643
      %739 = vmatpush1.bf16.msra.mxu0 %v642
      %740 = vmatprep.subr.bf16.mxu0 %v645
      %741 = vmatpush1.bf16.msra.mxu0 %v644
      %742 = vmatprep.subr.bf16.mxu0 %v647
      %743 = vmatpush1.bf16.msra.mxu0 %v646
      %744 = vmatprep.mubr.bf16.mxu0 %v389
      %745 = vmatmul.mubr.bf16.gmra.mrb[0].mxu0 %v388
      %v746 = vpop.f32.mrb[0].mxu0
      %v747 = vadd.f32 %v465, %v746
      %v748 = vpop.f32.mrb[0].mxu0
      %v749 = vadd.f32 %v469, %v748
      %v750 = vpop.f32.mrb[0].mxu0
      %v751 = vadd.f32 %v465, %v750
      %v752 = vpop.f32.mrb[0].mxu0
      %v753 = vadd.f32 %v469, %v752
      %754 = vmatprep.mubr.bf16.mxu0 %v392
      %755 = vmatmul.mubr.bf16.gmra.mrb[0].mxu0 %v391
      %v756 = vpop.f32.mrb[0].mxu0
      %v757 = vadd.f32 %v465, %v756
      %v758 = vpop.f32.mrb[0].mxu0
      %v759 = vadd.f32 %v469, %v758
      %v760 = vpop.f32.mrb[0].mxu0
      %v761 = vadd.f32 %v465, %v760
      %v762 = vpop.f32.mrb[0].mxu0
      %v763 = vadd.f32 %v469, %v762
      %764 = vmatprep.mubr.bf16.mxu0 %v395
      %765 = vmatmul.mubr.bf16.gmra.mrb[0].mxu0 %v394
      %v766 = vpop.f32.mrb[0].mxu0
      %v767 = vadd.f32 %v465, %v766
      %v768 = vpop.f32.mrb[0].mxu0
      %v769 = vadd.f32 %v469, %v768
      %v770 = vpop.f32.mrb[0].mxu0
      %v771 = vadd.f32 %v465, %v770
      %v772 = vpop.f32.mrb[0].mxu0
      %v773 = vadd.f32 %v469, %v772
      %774 = vmatprep.mubr.bf16.mxu0 %v398
      %775 = vmatmul.mubr.bf16.gmra.mrb[0].mxu0 %v397
      %v776 = vpop.f32.mrb[0].mxu0
      %v777 = vadd.f32 %v465, %v776
      %v778 = vpop.f32.mrb[0].mxu0
      %v779 = vadd.f32 %v469, %v778
      %v780 = vpop.f32.mrb[0].mxu0
      %v781 = vadd.f32 %v465, %v780
      %v782 = vpop.f32.mrb[0].mxu0
      %v783 = vadd.f32 %v469, %v782
      %784 = vmatprep.mubr.bf16.mxu0 %v401
      %785 = vmatmul.mubr.bf16.gmra.mrb[0].mxu0 %v400
      %v786 = vpop.f32.mrb[0].mxu0
      %v787 = vadd.f32 %v465, %v786
      %v788 = vpop.f32.mrb[0].mxu0
      %v789 = vadd.f32 %v469, %v788
      %v790 = vpop.f32.mrb[0].mxu0
      %v791 = vadd.f32 %v465, %v790
      %v792 = vpop.f32.mrb[0].mxu0
      %v793 = vadd.f32 %v469, %v792
      %794 = vmatprep.mubr.bf16.mxu0 %v404
      %795 = vmatmul.mubr.bf16.gmra.mrb[0].mxu0 %v403
      %v796 = vpop.f32.mrb[0].mxu0
      %v797 = vadd.f32 %v465, %v796
      %v798 = vpop.f32.mrb[0].mxu0
      %v799 = vadd.f32 %v469, %v798
      %v800 = vpop.f32.mrb[0].mxu0
      %v801 = vadd.f32 %v465, %v800
      %v802 = vpop.f32.mrb[0].mxu0
      %v803 = vadd.f32 %v469, %v802
      %804 = vmatprep.mubr.bf16.mxu0 %v407
      %805 = vmatmul.mubr.bf16.gmra.mrb[0].mxu0 %v406
      %v806 = vpop.f32.mrb[0].mxu0
      %v807 = vadd.f32 %v465, %v806
      %v808 = vpop.f32.mrb[0].mxu0
      %v809 = vadd.f32 %v469, %v808
      %v810 = vpop.f32.mrb[0].mxu0
      %v811 = vadd.f32 %v465, %v810
      %v812 = vpop.f32.mrb[0].mxu0
      %v813 = vadd.f32 %v469, %v812
      %814 = vmatprep.mubr.bf16.mxu0 %v410
      %815 = vmatmul.mubr.bf16.gmra.mrb[0].mxu0 %v409
      %v816 = vpop.f32.mrb[0].mxu0
      %v817 = vadd.f32 %v465, %v816
      %v818 = vpop.f32.mrb[0].mxu0
      %v819 = vadd.f32 %v469, %v818
      %v820 = vpop.f32.mrb[0].mxu0
      %v821 = vadd.f32 %v465, %v820
      %v822 = vpop.f32.mrb[0].mxu0
      %v823 = vadd.f32 %v469, %v822
      %824 = vdwg.mxu0
      %825 = vmatprep.subr.bf16.mxu0 %v649
      %826 = vmatpush1.bf16.msra.mxu0 %v648
      %827 = vmatprep.subr.bf16.mxu0 %v651
      %828 = vmatpush1.bf16.msra.mxu0 %v650
      %829 = vmatprep.subr.bf16.mxu0 %v653
      %830 = vmatpush1.bf16.msra.mxu0 %v652
      %831 = vmatprep.subr.bf16.mxu0 %v655
      %832 = vmatpush1.bf16.msra.mxu0 %v654
      %833 = vmatprep.subr.bf16.mxu0 %v657
      %834 = vmatpush1.bf16.msra.mxu0 %v656
      %835 = vmatprep.subr.bf16.mxu0 %v659
      %836 = vmatpush1.bf16.msra.mxu0 %v658
      %837 = vmatprep.subr.bf16.mxu0 %v661
      %838 = vmatpush1.bf16.msra.mxu0 %v660
      %839 = vmatprep.subr.bf16.mxu0 %v663
      %840 = vmatpush1.bf16.msra.mxu0 %v662
      %841 = vmatprep.subr.bf16.mxu0 0
      %842 = vmatpush1.bf16.msra.mxu0 0
      %843 = vmatprep.subr.bf16.mxu0 0
      %844 = vmatpush1.bf16.msra.mxu0 0
      %845 = vmatprep.subr.bf16.mxu0 0
      %846 = vmatpush1.bf16.msra.mxu0 0
      %847 = vmatprep.subr.bf16.mxu0 0
      %848 = vmatpush1.bf16.msra.mxu0 0
      %849 = vmatprep.subr.bf16.mxu0 0
      %850 = vmatpush1.bf16.msra.mxu0 0
      %851 = vmatprep.subr.bf16.mxu0 0
      %852 = vmatpush1.bf16.msra.mxu0 0
      %853 = vmatprep.subr.bf16.mxu0 0
      %854 = vmatpush1.bf16.msra.mxu0 0
      %855 = vmatprep.subr.bf16.mxu0 0
      %856 = vmatpush1.bf16.msra.mxu0 0
      %857 = vmatprep.mubr.bf16.mxu0 0
      %858 = vmatmul.mubr.bf16.gmra.mrb[0].mxu0 %v390
      %v859 = vpop.f32.mrb[0].mxu0
      %v860 = vadd.f32 %v747, %v859
      %v861 = vpop.f32.mrb[0].mxu0
      %v862 = vadd.f32 %v749, %v861
      %v863 = vpop.f32.mrb[0].mxu0
      %v864 = vadd.f32 %v751, %v863
      %v865 = vpop.f32.mrb[0].mxu0
      %v866 = vadd.f32 %v753, %v865
      %867 = vmatprep.mubr.bf16.mxu0 0
      %868 = vmatmul.mubr.bf16.gmra.mrb[0].mxu0 %v393
      %v869 = vpop.f32.mrb[0].mxu0
      %v870 = vadd.f32 %v757, %v869
      %v871 = vpop.f32.mrb[0].mxu0
      %v872 = vadd.f32 %v759, %v871
      %v873 = vpop.f32.mrb[0].mxu0
      %v874 = vadd.f32 %v761, %v873
      %v875 = vpop.f32.mrb[0].mxu0
      %v876 = vadd.f32 %v763, %v875
      %877 = vmatprep.mubr.bf16.mxu0 0
      %878 = vmatmul.mubr.bf16.gmra.mrb[0].mxu0 %v396
      %v879 = vpop.f32.mrb[0].mxu0
      %v880 = vadd.f32 %v767, %v879
      %v881 = vpop.f32.mrb[0].mxu0
      %v882 = vadd.f32 %v769, %v881
      %v883 = vpop.f32.mrb[0].mxu0
      %v884 = vadd.f32 %v771, %v883
      %v885 = vpop.f32.mrb[0].mxu0
      %v886 = vadd.f32 %v773, %v885
      %887 = vmatprep.mubr.bf16.mxu0 0
      %888 = vmatmul.mubr.bf16.gmra.mrb[0].mxu0 %v399
      %v889 = vpop.f32.mrb[0].mxu0
      %v890 = vadd.f32 %v777, %v889
      %v891 = vpop.f32.mrb[0].mxu0
      %v892 = vadd.f32 %v779, %v891
      %v893 = vpop.f32.mrb[0].mxu0
      %v894 = vadd.f32 %v781, %v893
      %v895 = vpop.f32.mrb[0].mxu0
      %v896 = vadd.f32 %v783, %v895
      %897 = vmatprep.mubr.bf16.mxu0 0
      %898 = vmatmul.mubr.bf16.gmra.mrb[0].mxu0 %v402
      %v899 = vpop.f32.mrb[0].mxu0
      %v900 = vadd.f32 %v787, %v899
      %v901 = vpop.f32.mrb[0].mxu0
      %v902 = vadd.f32 %v789, %v901
      %v903 = vpop.f32.mrb[0].mxu0
      %v904 = vadd.f32 %v791, %v903
      %v905 = vpop.f32.mrb[0].mxu0
      %v906 = vadd.f32 %v793, %v905
      %907 = vmatprep.mubr.bf16.mxu0 0
      %908 = vmatmul.mubr.bf16.gmra.mrb[0].mxu0 %v405
      %v909 = vpop.f32.mrb[0].mxu0
      %v910 = vadd.f32 %v797, %v909
      %v911 = vpop.f32.mrb[0].mxu0
      %v912 = vadd.f32 %v799, %v911
      %v913 = vpop.f32.mrb[0].mxu0
      %v914 = vadd.f32 %v801, %v913
      %v915 = vpop.f32.mrb[0].mxu0
      %v916 = vadd.f32 %v803, %v915
      %917 = vmatprep.mubr.bf16.mxu0 0
      %918 = vmatmul.mubr.bf16.gmra.mrb[0].mxu0 %v408
      %v919 = vpop.f32.mrb[0].mxu0
      %v920 = vadd.f32 %v807, %v919
      %v921 = vpop.f32.mrb[0].mxu0
      %v922 = vadd.f32 %v809, %v921
      %v923 = vpop.f32.mrb[0].mxu0
      %v924 = vadd.f32 %v811, %v923
      %v925 = vpop.f32.mrb[0].mxu0
      %v926 = vadd.f32 %v813, %v925
      %927 = vmatprep.mubr.bf16.mxu0 0
      %928 = vmatmul.mubr.bf16.gmra.mrb[0].mxu0 %v411
      %v929 = vpop.f32.mrb[0].mxu0
      %v930 = vadd.f32 %v817, %v929
      %v931 = vpop.f32.mrb[0].mxu0
      %v932 = vadd.f32 %v819, %v931
      %v933 = vpop.f32.mrb[0].mxu0
      %v934 = vadd.f32 %v821, %v933
      %v935 = vpop.f32.mrb[0].mxu0
      %v936 = vadd.f32 %v823, %v935
      %937 = vdwg.mxu0
      %v938 = vmax.f32 %v860, 0.0
      %v939 = vmax.f32 %v862, 0.0
      %v940 = vmax.f32 %v864, 0.0
      %v941 = vmax.f32 %v866, 0.0
      %v942 = vmax.f32 %v870, 0.0
      %v943 = vmax.f32 %v872, 0.0
      %v944 = vmax.f32 %v874, 0.0
      %v945 = vmax.f32 %v876, 0.0
      %v946 = vmax.f32 %v880, 0.0
      %v947 = vmax.f32 %v882, 0.0
      %v948 = vmax.f32 %v884, 0.0
      %v949 = vmax.f32 %v886, 0.0
      %v950 = vmax.f32 %v890, 0.0
      %v951 = vmax.f32 %v892, 0.0
      %v952 = vmax.f32 %v894, 0.0
      %v953 = vmax.f32 %v896, 0.0
      %v954 = vmax.f32 %v900, 0.0
      %v955 = vmax.f32 %v902, 0.0
      %v956 = vmax.f32 %v904, 0.0
      %v957 = vmax.f32 %v906, 0.0
      %v958 = vmax.f32 %v910, 0.0
      %v959 = vmax.f32 %v912, 0.0
      %v960 = vmax.f32 %v914, 0.0
      %v961 = vmax.f32 %v916, 0.0
      %v962 = vmax.f32 %v920, 0.0
      %v963 = vmax.f32 %v922, 0.0
      %v964 = vmax.f32 %v924, 0.0
      %v965 = vmax.f32 %v926, 0.0
      %v966 = vmax.f32 %v930, 0.0
      %v967 = vmax.f32 %v932, 0.0
      %v968 = vmax.f32 %v934, 0.0
      %v969 = vmax.f32 %v936, 0.0
      %v970 = vpack.c.bf16 %v940, %v938
      %v971 = vpack.c.bf16 %v941, %v939
      %v972 = vpack.c.bf16 %v944, %v942
      %v973 = vpack.c.bf16 %v945, %v943
      %v974 = vpack.c.bf16 %v948, %v946
      %v975 = vpack.c.bf16 %v949, %v947
      %v976 = vpack.c.bf16 %v952, %v950
      %v977 = vpack.c.bf16 %v953, %v951
      %v978 = vpack.c.bf16 %v956, %v954
      %v979 = vpack.c.bf16 %v957, %v955
      %v980 = vpack.c.bf16 %v960, %v958
      %v981 = vpack.c.bf16 %v961, %v959
      %v982 = vpack.c.bf16 %v964, %v962
      %v983 = vpack.c.bf16 %v965, %v963
      %v984 = vpack.c.bf16 %v968, %v966
      %v985 = vpack.c.bf16 %v969, %v967
      %v986 = vld [vmem:[%s3] sm:$0xf]
      %v987 = vld [vmem:[%s3 + $0x4] sm:$0xf]
      %v988 = vld [vmem:[%s3 + $0x8] sm:$0xf]
      %v989 = vld [vmem:[%s3 + $0xc] sm:$0xf]
      %v990 = vld [vmem:[%s3 + $0x10] sm:$0xf]
      %v991 = vld [vmem:[%s3 + $0x14] sm:$0xf]
      %v992 = vld [vmem:[%s3 + $0x18] sm:$0xf]
      %v993 = vld [vmem:[%s3 + $0x1c] sm:$0xf]
      %v994 = vld [vmem:[%s3 + $0x20] sm:$0xf]
      %v995 = vld [vmem:[%s3 + $0x24] sm:$0xf]
      %v996 = vld [vmem:[%s3 + $0x28] sm:$0xf]
      %v997 = vld [vmem:[%s3 + $0x2c] sm:$0xf]
      %v998 = vld [vmem:[%s3 + $0x30] sm:$0xf]
      %v999 = vld [vmem:[%s3 + $0x34] sm:$0xf]
      %v1000 = vld [vmem:[%s3 + $0x38] sm:$0xf]
      %v1001 = vld [vmem:[%s3 + $0x3c] sm:$0xf]
      %v1002 = vld [vmem:[%s3 + $0x40] sm:$0xf]
      %v1003 = vld [vmem:[%s3 + $0x44] sm:$0xf]
      %v1004 = vld [vmem:[%s3 + $0x48] sm:$0xf]
      %v1005 = vld [vmem:[%s3 + $0x4c] sm:$0xf]
      %v1006 = vld [vmem:[%s3 + $0x50] sm:$0xf]
      %v1007 = vld [vmem:[%s3 + $0x54] sm:$0xf]
      %v1008 = vld [vmem:[%s3 + $0x58] sm:$0xf]
      %v1009 = vld [vmem:[%s3 + $0x5c] sm:$0xf]
      %v1010 = vld [vmem:[%s3 + $0x60] sm:$0xf]
      %v1011 = vld [vmem:[%s3 + $0x64] sm:$0xf]
      %v1012 = vld [vmem:[%s3 + $0x68] sm:$0xf]
      %v1013 = vld [vmem:[%s3 + $0x6c] sm:$0xf]
      %v1014 = vld [vmem:[%s3 + $0x70] sm:$0xf]
      %v1015 = vld [vmem:[%s3 + $0x74] sm:$0xf]
      %v1016 = vld [vmem:[%s3 + $0x78] sm:$0xf]
      %v1017 = vld [vmem:[%s3 + $0x7c] sm:$0xf]
      %v1018 = vld [vmem:[%s4] sm:$0x1]
      %v1020 = vlaneseq
      %v1021 = vshrl.u32 %v1020, 7
      %v1022 = vsub.s32 0, %v1021
      %v1023 = vrot.slane %v1018, %v1022
      %v1057 = vunpack.c.l.b16 %v986
      %v1058 = vunpack.c.l.b16 %v987
      %v1059 = vunpack.c.l.b16 %v988
      %v1060 = vunpack.c.l.b16 %v989
      %v1061 = vunpack.c.l.b16 %v990
      %v1062 = vunpack.c.l.b16 %v991
      %v1063 = vunpack.c.l.b16 %v992
      %v1064 = vunpack.c.l.b16 %v993
      %v1065 = vunpack.c.l.b16 %v994
      %v1066 = vunpack.c.l.b16 %v995
      %v1067 = vunpack.c.l.b16 %v996
      %v1068 = vunpack.c.l.b16 %v997
      %v1069 = vunpack.c.l.b16 %v998
      %v1070 = vunpack.c.l.b16 %v999
      %v1071 = vunpack.c.l.b16 %v1000
      %v1072 = vunpack.c.l.b16 %v1001
      %v1073 = vunpack.c.l.b16 %v1002
      %v1074 = vunpack.c.l.b16 %v1003
      %v1075 = vunpack.c.l.b16 %v1004
      %v1076 = vunpack.c.l.b16 %v1005
      %v1077 = vunpack.c.l.b16 %v1006
      %v1078 = vunpack.c.l.b16 %v1007
      %v1079 = vunpack.c.l.b16 %v1008
      %v1080 = vunpack.c.l.b16 %v1009
      %v1081 = vunpack.c.l.b16 %v1010
      %v1082 = vunpack.c.l.b16 %v1011
      %v1083 = vunpack.c.l.b16 %v1012
      %v1084 = vunpack.c.l.b16 %v1013
      %v1085 = vunpack.c.l.b16 %v1014
      %v1086 = vunpack.c.l.b16 %v1015
      %v1087 = vunpack.c.l.b16 %v1016
      %v1088 = vunpack.c.l.b16 %v1017
      %v1089 = vpack.c.b16 %v1058, %v1057
      %v1090 = vpack.c.b16 %v1060, %v1059
      %v1091 = vpack.c.b16 %v1062, %v1061
      %v1092 = vpack.c.b16 %v1064, %v1063
      %v1093 = vpack.c.b16 %v1066, %v1065
      %v1094 = vpack.c.b16 %v1068, %v1067
      %v1095 = vpack.c.b16 %v1070, %v1069
      %v1096 = vpack.c.b16 %v1072, %v1071
      %v1097 = vpack.c.b16 %v1074, %v1073
      %v1098 = vpack.c.b16 %v1076, %v1075
      %v1099 = vpack.c.b16 %v1078, %v1077
      %v1100 = vpack.c.b16 %v1080, %v1079
      %v1101 = vpack.c.b16 %v1082, %v1081
      %v1102 = vpack.c.b16 %v1084, %v1083
      %v1103 = vpack.c.b16 %v1086, %v1085
      %v1104 = vpack.c.b16 %v1088, %v1087
      %1121 = vmatprep.subr.bf16.mxu0 0
      %1122 = vmatpush1.bf16.msra.mxu0 %v1089
      %1123 = vmatprep.subr.bf16.mxu0 0
      %1124 = vmatpush1.bf16.msra.mxu0 %v1090
      %1125 = vmatprep.subr.bf16.mxu0 0
      %1126 = vmatpush1.bf16.msra.mxu0 %v1091
      %1127 = vmatprep.subr.bf16.mxu0 0
      %1128 = vmatpush1.bf16.msra.mxu0 %v1092
      %1129 = vmatprep.subr.bf16.mxu0 0
      %1130 = vmatpush1.bf16.msra.mxu0 %v1093
      %1131 = vmatprep.subr.bf16.mxu0 0
      %1132 = vmatpush1.bf16.msra.mxu0 %v1094
      %1133 = vmatprep.subr.bf16.mxu0 0
      %1134 = vmatpush1.bf16.msra.mxu0 %v1095
      %1135 = vmatprep.subr.bf16.mxu0 0
      %1136 = vmatpush1.bf16.msra.mxu0 %v1096
      %1137 = vmatprep.subr.bf16.mxu0 0
      %1138 = vmatpush1.bf16.msra.mxu0 %v1097
      %1139 = vmatprep.subr.bf16.mxu0 0
      %1140 = vmatpush1.bf16.msra.mxu0 %v1098
      %1141 = vmatprep.subr.bf16.mxu0 0
      %1142 = vmatpush1.bf16.msra.mxu0 %v1099
      %1143 = vmatprep.subr.bf16.mxu0 0
      %1144 = vmatpush1.bf16.msra.mxu0 %v1100
      %1145 = vmatprep.subr.bf16.mxu0 0
      %1146 = vmatpush1.bf16.msra.mxu0 %v1101
      %1147 = vmatprep.subr.bf16.mxu0 0
      %1148 = vmatpush1.bf16.msra.mxu0 %v1102
      %1149 = vmatprep.subr.bf16.mxu0 0
      %1150 = vmatpush1.bf16.msra.mxu0 %v1103
      %1151 = vmatprep.subr.bf16.mxu0 0
      %1152 = vmatpush1.bf16.msra.mxu0 %v1104
      %1153 = vmatprep.mubr.bf16.mxu0 %v971
      %1154 = vmatmul.mubr.bf16.gmra.mrb[0].mxu0 %v970
      %v1155 = vpop.f32.mrb[0].mxu0
      %v1156 = vadd.f32 %v1023, %v1155
      %v1157 = vpop.f32.mrb[0].mxu0
      %v1158 = vpop.f32.mrb[0].mxu0
      %v1159 = vadd.f32 %v1023, %v1158
      %v1160 = vpop.f32.mrb[0].mxu0
      %1161 = vmatprep.mubr.bf16.mxu0 %v973
      %1162 = vmatmul.mubr.bf16.gmra.mrb[0].mxu0 %v972
      %v1163 = vpop.f32.mrb[0].mxu0
      %v1164 = vadd.f32 %v1023, %v1163
      %v1165 = vpop.f32.mrb[0].mxu0
      %v1166 = vpop.f32.mrb[0].mxu0
      %v1167 = vadd.f32 %v1023, %v1166
      %v1168 = vpop.f32.mrb[0].mxu0
      %1169 = vmatprep.mubr.bf16.mxu0 %v975
      %1170 = vmatmul.mubr.bf16.gmra.mrb[0].mxu0 %v974
      %v1171 = vpop.f32.mrb[0].mxu0
      %v1172 = vadd.f32 %v1023, %v1171
      %v1173 = vpop.f32.mrb[0].mxu0
      %v1174 = vpop.f32.mrb[0].mxu0
      %v1175 = vadd.f32 %v1023, %v1174
      %v1176 = vpop.f32.mrb[0].mxu0
      %1177 = vmatprep.mubr.bf16.mxu0 %v977
      %1178 = vmatmul.mubr.bf16.gmra.mrb[0].mxu0 %v976
      %v1179 = vpop.f32.mrb[0].mxu0
      %v1180 = vadd.f32 %v1023, %v1179
      %v1181 = vpop.f32.mrb[0].mxu0
      %v1182 = vpop.f32.mrb[0].mxu0
      %v1183 = vadd.f32 %v1023, %v1182
      %v1184 = vpop.f32.mrb[0].mxu0
      %1185 = vmatprep.mubr.bf16.mxu0 %v979
      %1186 = vmatmul.mubr.bf16.gmra.mrb[0].mxu0 %v978
      %v1187 = vpop.f32.mrb[0].mxu0
      %v1188 = vadd.f32 %v1023, %v1187
      %v1189 = vpop.f32.mrb[0].mxu0
      %v1190 = vpop.f32.mrb[0].mxu0
      %v1191 = vadd.f32 %v1023, %v1190
      %v1192 = vpop.f32.mrb[0].mxu0
      %1193 = vmatprep.mubr.bf16.mxu0 %v981
      %1194 = vmatmul.mubr.bf16.gmra.mrb[0].mxu0 %v980
      %v1195 = vpop.f32.mrb[0].mxu0
      %v1196 = vadd.f32 %v1023, %v1195
      %v1197 = vpop.f32.mrb[0].mxu0
      %v1198 = vpop.f32.mrb[0].mxu0
      %v1199 = vadd.f32 %v1023, %v1198
      %v1200 = vpop.f32.mrb[0].mxu0
      %1201 = vmatprep.mubr.bf16.mxu0 %v983
      %1202 = vmatmul.mubr.bf16.gmra.mrb[0].mxu0 %v982
      %v1203 = vpop.f32.mrb[0].mxu0
      %v1204 = vadd.f32 %v1023, %v1203
      %v1205 = vpop.f32.mrb[0].mxu0
      %v1206 = vpop.f32.mrb[0].mxu0
      %v1207 = vadd.f32 %v1023, %v1206
      %v1208 = vpop.f32.mrb[0].mxu0
      %1209 = vmatprep.mubr.bf16.mxu0 %v985
      %1210 = vmatmul.mubr.bf16.gmra.mrb[0].mxu0 %v984
      %v1211 = vpop.f32.mrb[0].mxu0
      %v1212 = vadd.f32 %v1023, %v1211
      %v1213 = vpop.f32.mrb[0].mxu0
      %v1214 = vpop.f32.mrb[0].mxu0
      %v1215 = vadd.f32 %v1023, %v1214
      %v1216 = vpop.f32.mrb[0].mxu0
      %1217 = vdwg.mxu0
      %v1218 = vmax.f32 %v1156, 0.0
      %v1219 = vmax.f32 %v1159, 0.0
      %v1220 = vmax.f32 %v1164, 0.0
      %v1221 = vmax.f32 %v1167, 0.0
      %v1222 = vmax.f32 %v1172, 0.0
      %v1223 = vmax.f32 %v1175, 0.0
      %v1224 = vmax.f32 %v1180, 0.0
      %v1225 = vmax.f32 %v1183, 0.0
      %v1226 = vmax.f32 %v1188, 0.0
      %v1227 = vmax.f32 %v1191, 0.0
      %v1228 = vmax.f32 %v1196, 0.0
      %v1229 = vmax.f32 %v1199, 0.0
      %v1230 = vmax.f32 %v1204, 0.0
      %v1231 = vmax.f32 %v1207, 0.0
      %v1232 = vmax.f32 %v1212, 0.0
      %v1233 = vmax.f32 %v1215, 0.0
      %v1234 = vpack.c.bf16 %v1219, %v1218
      %v1235 = vpack.c.bf16 %v1221, %v1220
      %v1236 = vpack.c.bf16 %v1223, %v1222
      %v1237 = vpack.c.bf16 %v1225, %v1224
      %v1238 = vpack.c.bf16 %v1227, %v1226
      %v1239 = vpack.c.bf16 %v1229, %v1228
      %v1240 = vpack.c.bf16 %v1231, %v1230
      %v1241 = vpack.c.bf16 %v1233, %v1232
      %v1242 = vld [vmem:[%s5] sm:$0xf]
      %v1243 = vld [vmem:[%s5 + $0x4] sm:$0xf]
      %v1244 = vld [vmem:[%s5 + $0x8] sm:$0xf]
      %v1245 = vld [vmem:[%s5 + $0xc] sm:$0xf]
      %v1246 = vld [vmem:[%s5 + $0x10] sm:$0xf]
      %v1247 = vld [vmem:[%s5 + $0x14] sm:$0xf]
      %v1248 = vld [vmem:[%s5 + $0x18] sm:$0xf]
      %v1249 = vld [vmem:[%s5 + $0x1c] sm:$0xf]
      %v1250 = vld [vmem:[%s5 + $0x20] sm:$0xf]
      %v1251 = vld [vmem:[%s5 + $0x24] sm:$0xf]
      %v1252 = vld [vmem:[%s5 + $0x28] sm:$0xf]
      %v1253 = vld [vmem:[%s5 + $0x2c] sm:$0xf]
      %v1254 = vld [vmem:[%s5 + $0x30] sm:$0xf]
      %v1255 = vld [vmem:[%s5 + $0x34] sm:$0xf]
      %v1256 = vld [vmem:[%s5 + $0x38] sm:$0xf]
      %v1257 = vld [vmem:[%s5 + $0x3c] sm:$0xf]
      %v1258 = vld [vmem:[%s6] sm:$0x1]
      %v1260 = vlaneseq
      %v1261 = vshrl.u32 %v1260, 7
      %v1262 = vsub.s32 0, %v1261
      %v1263 = vrot.slane %v1258, %v1262
      %v1281 = vunpack.c.l.b16 %v1242
      %v1282 = vunpack.c.l.b16 %v1243
      %v1283 = vunpack.c.l.b16 %v1244
      %v1284 = vunpack.c.l.b16 %v1245
      %v1285 = vunpack.c.l.b16 %v1246
      %v1286 = vunpack.c.l.b16 %v1247
      %v1287 = vunpack.c.l.b16 %v1248
      %v1288 = vunpack.c.l.b16 %v1249
      %v1289 = vunpack.c.l.b16 %v1250
      %v1290 = vunpack.c.l.b16 %v1251
      %v1291 = vunpack.c.l.b16 %v1252
      %v1292 = vunpack.c.l.b16 %v1253
      %v1293 = vunpack.c.l.b16 %v1254
      %v1294 = vunpack.c.l.b16 %v1255
      %v1295 = vunpack.c.l.b16 %v1256
      %v1296 = vunpack.c.l.b16 %v1257
      %v1297 = vpack.c.b16 %v1282, %v1281
      %v1298 = vpack.c.b16 %v1284, %v1283
      %v1299 = vpack.c.b16 %v1286, %v1285
      %v1300 = vpack.c.b16 %v1288, %v1287
      %v1301 = vpack.c.b16 %v1290, %v1289
      %v1302 = vpack.c.b16 %v1292, %v1291
      %v1303 = vpack.c.b16 %v1294, %v1293
      %v1304 = vpack.c.b16 %v1296, %v1295
      %1313 = vmatprep.subr.bf16.mxu0 0
      %1314 = vmatpush1.bf16.msra.mxu0 %v1297
      %1315 = vmatprep.subr.bf16.mxu0 0
      %1316 = vmatpush1.bf16.msra.mxu0 %v1298
      %1317 = vmatprep.subr.bf16.mxu0 0
      %1318 = vmatpush1.bf16.msra.mxu0 %v1299
      %1319 = vmatprep.subr.bf16.mxu0 0
      %1320 = vmatpush1.bf16.msra.mxu0 %v1300
      %1321 = vmatprep.subr.bf16.mxu0 0
      %1322 = vmatpush1.bf16.msra.mxu0 %v1301
      %1323 = vmatprep.subr.bf16.mxu0 0
      %1324 = vmatpush1.bf16.msra.mxu0 %v1302
      %1325 = vmatprep.subr.bf16.mxu0 0
      %1326 = vmatpush1.bf16.msra.mxu0 %v1303
      %1327 = vmatprep.subr.bf16.mxu0 0
      %1328 = vmatpush1.bf16.msra.mxu0 %v1304
      %1329 = vmatprep.subr.bf16.mxu0 0
      %1330 = vmatpush1.bf16.msra.mxu0 0
      %1331 = vmatprep.subr.bf16.mxu0 0
      %1332 = vmatpush1.bf16.msra.mxu0 0
      %1333 = vmatprep.subr.bf16.mxu0 0
      %1334 = vmatpush1.bf16.msra.mxu0 0
      %1335 = vmatprep.subr.bf16.mxu0 0
      %1336 = vmatpush1.bf16.msra.mxu0 0
      %1337 = vmatprep.subr.bf16.mxu0 0
      %1338 = vmatpush1.bf16.msra.mxu0 0
      %1339 = vmatprep.subr.bf16.mxu0 0
      %1340 = vmatpush1.bf16.msra.mxu0 0
      %1341 = vmatprep.subr.bf16.mxu0 0
      %1342 = vmatpush1.bf16.msra.mxu0 0
      %1343 = vmatprep.subr.bf16.mxu0 0
      %1344 = vmatpush1.bf16.msra.mxu0 0
      %1345 = vmatprep.mubr.bf16.mxu0 0
      %1346 = vmatmul.mubr.bf16.gmra.mrb[0].mxu0 %v1234
      %v1347 = vpop.f32.mrb[0].mxu0
      %v1348 = vadd.f32 %v1263, %v1347
      %v1349 = vpop.f32.mrb[0].mxu0
      %v1350 = vpop.f32.mrb[0].mxu0
      %v1351 = vadd.f32 %v1263, %v1350
      %v1352 = vpop.f32.mrb[0].mxu0
      %1353 = vmatprep.mubr.bf16.mxu0 0
      %1354 = vmatmul.mubr.bf16.gmra.mrb[0].mxu0 %v1235
      %v1355 = vpop.f32.mrb[0].mxu0
      %v1356 = vadd.f32 %v1263, %v1355
      %v1357 = vpop.f32.mrb[0].mxu0
      %v1358 = vpop.f32.mrb[0].mxu0
      %v1359 = vadd.f32 %v1263, %v1358
      %v1360 = vpop.f32.mrb[0].mxu0
      %1361 = vmatprep.mubr.bf16.mxu0 0
      %1362 = vmatmul.mubr.bf16.gmra.mrb[0].mxu0 %v1236
      %v1363 = vpop.f32.mrb[0].mxu0
      %v1364 = vadd.f32 %v1263, %v1363
      %v1365 = vpop.f32.mrb[0].mxu0
      %v1366 = vpop.f32.mrb[0].mxu0
      %v1367 = vadd.f32 %v1263, %v1366
      %v1368 = vpop.f32.mrb[0].mxu0
      %1369 = vmatprep.mubr.bf16.mxu0 0
      %1370 = vmatmul.mubr.bf16.gmra.mrb[0].mxu0 %v1237
      %v1371 = vpop.f32.mrb[0].mxu0
      %v1372 = vadd.f32 %v1263, %v1371
      %v1373 = vpop.f32.mrb[0].mxu0
      %v1374 = vpop.f32.mrb[0].mxu0
      %v1375 = vadd.f32 %v1263, %v1374
      %v1376 = vpop.f32.mrb[0].mxu0
      %1377 = vmatprep.mubr.bf16.mxu0 0
      %1378 = vmatmul.mubr.bf16.gmra.mrb[0].mxu0 %v1238
      %v1379 = vpop.f32.mrb[0].mxu0
      %v1380 = vadd.f32 %v1263, %v1379
      %v1381 = vpop.f32.mrb[0].mxu0
      %v1382 = vpop.f32.mrb[0].mxu0
      %v1383 = vadd.f32 %v1263, %v1382
      %v1384 = vpop.f32.mrb[0].mxu0
      %1385 = vmatprep.mubr.bf16.mxu0 0
      %1386 = vmatmul.mubr.bf16.gmra.mrb[0].mxu0 %v1239
      %v1387 = vpop.f32.mrb[0].mxu0
      %v1388 = vadd.f32 %v1263, %v1387
      %v1389 = vpop.f32.mrb[0].mxu0
      %v1390 = vpop.f32.mrb[0].mxu0
      %v1391 = vadd.f32 %v1263, %v1390
      %v1392 = vpop.f32.mrb[0].mxu0
      %1393 = vmatprep.mubr.bf16.mxu0 0
      %1394 = vmatmul.mubr.bf16.gmra.mrb[0].mxu0 %v1240
      %v1395 = vpop.f32.mrb[0].mxu0
      %v1396 = vadd.f32 %v1263, %v1395
      %v1397 = vpop.f32.mrb[0].mxu0
      %v1398 = vpop.f32.mrb[0].mxu0
      %v1399 = vadd.f32 %v1263, %v1398
      %v1400 = vpop.f32.mrb[0].mxu0
      %1401 = vmatprep.mubr.bf16.mxu0 0
      %1402 = vmatmul.mubr.bf16.gmra.mrb[0].mxu0 %v1241
      %v1403 = vpop.f32.mrb[0].mxu0
      %v1404 = vadd.f32 %v1263, %v1403
      %v1405 = vpop.f32.mrb[0].mxu0
      %v1406 = vpop.f32.mrb[0].mxu0
      %v1407 = vadd.f32 %v1263, %v1406
      %v1408 = vpop.f32.mrb[0].mxu0
      %1409 = vdwg.mxu0
      %v1410 = vmax.f32 %v1348, 0.0
      %v1411 = vmax.f32 %v1351, 0.0
      %v1412 = vmax.f32 %v1356, 0.0
      %v1413 = vmax.f32 %v1359, 0.0
      %v1414 = vmax.f32 %v1364, 0.0
      %v1415 = vmax.f32 %v1367, 0.0
      %v1416 = vmax.f32 %v1372, 0.0
      %v1417 = vmax.f32 %v1375, 0.0
      %v1418 = vmax.f32 %v1380, 0.0
      %v1419 = vmax.f32 %v1383, 0.0
      %v1420 = vmax.f32 %v1388, 0.0
      %v1421 = vmax.f32 %v1391, 0.0
      %v1422 = vmax.f32 %v1396, 0.0
      %v1423 = vmax.f32 %v1399, 0.0
      %v1424 = vmax.f32 %v1404, 0.0
      %v1425 = vmax.f32 %v1407, 0.0
      %vm1426 = vcmask 523264
      %v1427 = vsel %vm1426, %v1410, -inf
      %v1428 = vrot.slane %v1427, 4
      %v1429 = vmax.f32 %v1427, %v1428
      %v1430 = vrot.slane %v1429, 2
      %v1431 = vmax.f32 %v1429, %v1430
      %v1432 = vrot.slane %v1431, 1
      %v1433 = vmax.f32 %v1431, %v1432
      %v1434 = vsel %vm1426, %v1411, -inf
      %v1435 = vrot.slane %v1434, 4
      %v1436 = vmax.f32 %v1434, %v1435
      %v1437 = vrot.slane %v1436, 2
      %v1438 = vmax.f32 %v1436, %v1437
      %v1439 = vrot.slane %v1438, 1
      %v1440 = vmax.f32 %v1438, %v1439
      %v1441 = vsel %vm1426, %v1412, -inf
      %v1442 = vrot.slane %v1441, 4
      %v1443 = vmax.f32 %v1441, %v1442
      %v1444 = vrot.slane %v1443, 2
      %v1445 = vmax.f32 %v1443, %v1444
      %v1446 = vrot.slane %v1445, 1
      %v1447 = vmax.f32 %v1445, %v1446
      %v1448 = vsel %vm1426, %v1413, -inf
      %v1449 = vrot.slane %v1448, 4
      %v1450 = vmax.f32 %v1448, %v1449
      %v1451 = vrot.slane %v1450, 2
      %v1452 = vmax.f32 %v1450, %v1451
      %v1453 = vrot.slane %v1452, 1
      %v1454 = vmax.f32 %v1452, %v1453
      %v1455 = vsel %vm1426, %v1414, -inf
      %v1456 = vrot.slane %v1455, 4
      %v1457 = vmax.f32 %v1455, %v1456
      %v1458 = vrot.slane %v1457, 2
      %v1459 = vmax.f32 %v1457, %v1458
      %v1460 = vrot.slane %v1459, 1
      %v1461 = vmax.f32 %v1459, %v1460
      %v1462 = vsel %vm1426, %v1415, -inf
      %v1463 = vrot.slane %v1462, 4
      %v1464 = vmax.f32 %v1462, %v1463
      %v1465 = vrot.slane %v1464, 2
      %v1466 = vmax.f32 %v1464, %v1465
      %v1467 = vrot.slane %v1466, 1
      %v1468 = vmax.f32 %v1466, %v1467
      %v1469 = vsel %vm1426, %v1416, -inf
      %v1470 = vrot.slane %v1469, 4
      %v1471 = vmax.f32 %v1469, %v1470
      %v1472 = vrot.slane %v1471, 2
      %v1473 = vmax.f32 %v1471, %v1472
      %v1474 = vrot.slane %v1473, 1
      %v1475 = vmax.f32 %v1473, %v1474
      %v1476 = vsel %vm1426, %v1417, -inf
      %v1477 = vrot.slane %v1476, 4
      %v1478 = vmax.f32 %v1476, %v1477
      %v1479 = vrot.slane %v1478, 2
      %v1480 = vmax.f32 %v1478, %v1479
      %v1481 = vrot.slane %v1480, 1
      %v1482 = vmax.f32 %v1480, %v1481
      %v1483 = vsel %vm1426, %v1418, -inf
      %v1484 = vrot.slane %v1483, 4
      %v1485 = vmax.f32 %v1483, %v1484
      %v1486 = vrot.slane %v1485, 2
      %v1487 = vmax.f32 %v1485, %v1486
      %v1488 = vrot.slane %v1487, 1
      %v1489 = vmax.f32 %v1487, %v1488
      %v1490 = vsel %vm1426, %v1419, -inf
      %v1491 = vrot.slane %v1490, 4
      %v1492 = vmax.f32 %v1490, %v1491
      %v1493 = vrot.slane %v1492, 2
      %v1494 = vmax.f32 %v1492, %v1493
      %v1495 = vrot.slane %v1494, 1
      %v1496 = vmax.f32 %v1494, %v1495
      %v1497 = vsel %vm1426, %v1420, -inf
      %v1498 = vrot.slane %v1497, 4
      %v1499 = vmax.f32 %v1497, %v1498
      %v1500 = vrot.slane %v1499, 2
      %v1501 = vmax.f32 %v1499, %v1500
      %v1502 = vrot.slane %v1501, 1
      %v1503 = vmax.f32 %v1501, %v1502
      %v1504 = vsel %vm1426, %v1421, -inf
      %v1505 = vrot.slane %v1504, 4
      %v1506 = vmax.f32 %v1504, %v1505
      %v1507 = vrot.slane %v1506, 2
      %v1508 = vmax.f32 %v1506, %v1507
      %v1509 = vrot.slane %v1508, 1
      %v1510 = vmax.f32 %v1508, %v1509
      %v1511 = vsel %vm1426, %v1422, -inf
      %v1512 = vrot.slane %v1511, 4
      %v1513 = vmax.f32 %v1511, %v1512
      %v1514 = vrot.slane %v1513, 2
      %v1515 = vmax.f32 %v1513, %v1514
      %v1516 = vrot.slane %v1515, 1
      %v1517 = vmax.f32 %v1515, %v1516
      %v1518 = vsel %vm1426, %v1423, -inf
      %v1519 = vrot.slane %v1518, 4
      %v1520 = vmax.f32 %v1518, %v1519
      %v1521 = vrot.slane %v1520, 2
      %v1522 = vmax.f32 %v1520, %v1521
      %v1523 = vrot.slane %v1522, 1
      %v1524 = vmax.f32 %v1522, %v1523
      %v1525 = vsel %vm1426, %v1424, -inf
      %v1526 = vrot.slane %v1525, 4
      %v1527 = vmax.f32 %v1525, %v1526
      %v1528 = vrot.slane %v1527, 2
      %v1529 = vmax.f32 %v1527, %v1528
      %v1530 = vrot.slane %v1529, 1
      %v1531 = vmax.f32 %v1529, %v1530
      %v1532 = vsel %vm1426, %v1425, -inf
      %v1533 = vrot.slane %v1532, 4
      %v1534 = vmax.f32 %v1532, %v1533
      %v1535 = vrot.slane %v1534, 2
      %v1536 = vmax.f32 %v1534, %v1535
      %v1537 = vrot.slane %v1536, 1
      %v1538 = vmax.f32 %v1536, %v1537
      %v1539 = vpack.c.bf16 %v1433, %v1433
      %v1540 = vpack.c.bf16 %v1440, %v1440
      %v1541 = vpack.c.bf16 %v1447, %v1447
      %v1542 = vpack.c.bf16 %v1454, %v1454
      %v1543 = vpack.c.bf16 %v1461, %v1461
      %v1544 = vpack.c.bf16 %v1468, %v1468
      %v1545 = vpack.c.bf16 %v1475, %v1475
      %v1546 = vpack.c.bf16 %v1482, %v1482
      %v1547 = vpack.c.bf16 %v1489, %v1489
      %v1548 = vpack.c.bf16 %v1496, %v1496
      %v1549 = vpack.c.bf16 %v1503, %v1503
      %v1550 = vpack.c.bf16 %v1510, %v1510
      %v1551 = vpack.c.bf16 %v1517, %v1517
      %v1552 = vpack.c.bf16 %v1524, %v1524
      %v1553 = vpack.c.bf16 %v1531, %v1531
      %v1554 = vpack.c.bf16 %v1538, %v1538
      %v1555 = vld [vmem:[%s7] sm:$0xf]
      %v1556 = vld [vmem:[%s7 + $0x4] sm:$0xf]
      %v1557 = vld [vmem:[%s7 + $0x8] sm:$0xf]
      %v1558 = vld [vmem:[%s7 + $0xc] sm:$0xf]
      %v1559 = vld [vmem:[%s7 + $0x10] sm:$0xf]
      %v1560 = vld [vmem:[%s7 + $0x14] sm:$0xf]
      %v1561 = vld [vmem:[%s7 + $0x18] sm:$0xf]
      %v1562 = vld [vmem:[%s7 + $0x1c] sm:$0xf]
      %v1563 = vld [vmem:[%s8] sm:$0x1]
      %v1565 = vlaneseq
      %v1566 = vshrl.u32 %v1565, 7
      %v1567 = vsub.s32 0, %v1566
      %v1568 = vrot.slane %v1563, %v1567
      %v1586 = vunpack.c.l.b16 %v1539
      %v1587 = vunpack.c.l.b16 %v1540
      %v1588 = vunpack.c.l.b16 %v1541
      %v1589 = vunpack.c.l.b16 %v1542
      %v1590 = vunpack.c.l.b16 %v1543
      %v1591 = vunpack.c.l.b16 %v1544
      %v1592 = vunpack.c.l.b16 %v1545
      %v1593 = vunpack.c.l.b16 %v1546
      %v1594 = vunpack.c.l.b16 %v1547
      %v1595 = vunpack.c.l.b16 %v1548
      %v1596 = vunpack.c.l.b16 %v1549
      %v1597 = vunpack.c.l.b16 %v1550
      %v1598 = vunpack.c.l.b16 %v1551
      %v1599 = vunpack.c.l.b16 %v1552
      %v1600 = vunpack.c.l.b16 %v1553
      %v1601 = vunpack.c.l.b16 %v1554
      %vm1602 = vcmask 1041409
      %v1603 = vsel %vm1602, %v1587, %v1586
      %vm1604 = vcmask 1042434
      %v1605 = vsel %vm1604, %v1588, %v1603
      %vm1606 = vcmask 1043459
      %v1607 = vsel %vm1606, %v1589, %v1605
      %vm1608 = vcmask 1044484
      %v1609 = vsel %vm1608, %v1590, %v1607
      %vm1610 = vcmask 1045509
      %v1611 = vsel %vm1610, %v1591, %v1609
      %vm1612 = vcmask 1046534
      %v1613 = vsel %vm1612, %v1592, %v1611
      %vm1614 = vcmask 1047559
      %v1615 = vsel %vm1614, %v1593, %v1613
      %v1616 = vsel %vm1602, %v1595, %v1594
      %v1617 = vsel %vm1604, %v1596, %v1616
      %v1618 = vsel %vm1606, %v1597, %v1617
      %v1619 = vsel %vm1608, %v1598, %v1618
      %v1620 = vsel %vm1610, %v1599, %v1619
      %v1621 = vsel %vm1612, %v1600, %v1620
      %v1622 = vsel %vm1614, %v1601, %v1621
      %v1623 = vpack.c.b16 %v1622, %v1615
      %v1632 = vunpack.c.l.b16 %v1555
      %v1633 = vunpack.c.l.b16 %v1556
      %v1634 = vunpack.c.l.b16 %v1557
      %v1635 = vunpack.c.l.b16 %v1558
      %v1636 = vunpack.c.l.b16 %v1559
      %v1637 = vunpack.c.l.b16 %v1560
      %v1638 = vunpack.c.l.b16 %v1561
      %v1639 = vunpack.c.l.b16 %v1562
      %v1640 = vpack.c.b16 %v1633, %v1632
      %v1641 = vpack.c.b16 %v1635, %v1634
      %v1642 = vpack.c.b16 %v1637, %v1636
      %v1643 = vpack.c.b16 %v1639, %v1638
      %v1649 = vsel %vm1426, %v1623, 0
      %1651 = vmatprep.subr.bf16.mxu0 0
      %1652 = vmatpush1.bf16.msra.mxu0 %v1640
      %1653 = vmatprep.subr.bf16.mxu0 0
      %1654 = vmatpush1.bf16.msra.mxu0 %v1641
      %1655 = vmatprep.subr.bf16.mxu0 0
      %1656 = vmatpush1.bf16.msra.mxu0 %v1642
      %1657 = vmatprep.subr.bf16.mxu0 0
      %1658 = vmatpush1.bf16.msra.mxu0 %v1643
      %1659 = vmatprep.subr.bf16.mxu0 0
      %1660 = vmatpush1.bf16.msra.mxu0 0
      %1661 = vmatprep.subr.bf16.mxu0 0
      %1662 = vmatpush1.bf16.msra.mxu0 0
      %1663 = vmatprep.subr.bf16.mxu0 0
      %1664 = vmatpush1.bf16.msra.mxu0 0
      %1665 = vmatprep.subr.bf16.mxu0 0
      %1666 = vmatpush1.bf16.msra.mxu0 0
      %1667 = vmatprep.subr.bf16.mxu0 0
      %1668 = vmatpush1.bf16.msra.mxu0 0
      %1669 = vmatprep.subr.bf16.mxu0 0
      %1670 = vmatpush1.bf16.msra.mxu0 0
      %1671 = vmatprep.subr.bf16.mxu0 0
      %1672 = vmatpush1.bf16.msra.mxu0 0
      %1673 = vmatprep.subr.bf16.mxu0 0
      %1674 = vmatpush1.bf16.msra.mxu0 0
      %1675 = vmatprep.subr.bf16.mxu0 0
      %1676 = vmatpush1.bf16.msra.mxu0 0
      %1677 = vmatprep.subr.bf16.mxu0 0
      %1678 = vmatpush1.bf16.msra.mxu0 0
      %1679 = vmatprep.subr.bf16.mxu0 0
      %1680 = vmatpush1.bf16.msra.mxu0 0
      %1681 = vmatprep.subr.bf16.mxu0 0
      %1682 = vmatpush1.bf16.msra.mxu0 0
      %1683 = vmatprep.mubr.bf16.mxu0 0
      %1684 = vmatmul.mubr.bf16.gmra.mrb[0].mxu0 %v1649
      %v1685 = vpop.f32.mrb[0].mxu0
      %v1686 = vadd.f32 %v1568, %v1685
      %v1687 = vpop.f32.mrb[0].mxu0
      %v1688 = vpop.f32.mrb[0].mxu0
      %v1689 = vadd.f32 %v1568, %v1688
      %v1690 = vpop.f32.mrb[0].mxu0
      %1691 = vdwg.mxu0
      %v1692 = vlaneseq
      %v1693 = vand.u32 %v1692, 127
      %vm1694 = vcmp.eq.s32.totalorder %v1693, 0
      %v1695 = vxor.u32 %v1686, 2147483648
      %v1696 = vxor.u32 %v1689, 2147483648
      %v1697 = vmul.f32 %v1695, 1.442695
      %v1698 = vpow.pop %v1697
      %v1699 = vmul.f32 %v1696, 1.442695
      %v1700 = vpow.pop %v1699
      %v1701 = vadd.f32 %v1698, 1.0
      %v1702 = vadd.f32 %v1700, 1.0
      %v1703 = vrcp.pop %v1701
      %v1704 = vmul.f32 1.0, %v1703
      %v1705 = vrcp.pop %v1702
      %v1706 = vmul.f32 1.0, %v1705
      %v1707 = vsel %vm1694, %v1704, %v1686
      %v1708 = vsel %vm1694, %v1706, %v1689
      %1709 = vst [vmem:[%s337] sm:$0xff] %v1707
      %1710 = vst [vmem:[%s337 + $0x8] sm:$0xff] %v1708
      %s1711 = smul.u32 2, %s20
      %p1712 = scmp.lt.s32.totalorder %s1711, 3
      %s1713 = scalar_select %p1712, %s1711, 3
      %s1714 = smul.addr %s1713, 8
      %s1715 = scalar_lea.vmem %s9, %s1714
      // Predicated region
      $region57: #{minet_lnl_forward.1} parent=55 // pred_check
        %p1716 = pneg %p232
      $region58: #{minet_lnl_forward.1} parent=55 // pred_check_branch
        %1718 = sbr.rel (%p1716) target = $region60
      $region59: #{minet_lnl_forward.1} parent=55 // pred_region
        %s1719 = smul.u32 2, %s20
      $region60: #{minet_lnl_forward.1} parent=55 // pred_fallthru
        _
    $region56: #{minet_lnl_forward.1} parent=5 // pred_fallthru
      _
    %p1720 = scmp.le.s32.totalorder 2, %s15
    // Predicated region
    $region61: #{minet_lnl_forward.1} parent=5 // pred_check
      %p1721 = pneg %p1720
    $region62: #{minet_lnl_forward.1} parent=5 // pred_check_branch
      %1723 = sbr.rel (%p1721) target = $region64
    $region63: #{minet_lnl_forward.1} parent=5 // pred_region
      %s1724 = ssub.s32 %s15, 2
      // Predicated region
      $region65: #{minet_lnl_forward.1} parent=63 // pred_check
        %p1725 = pneg %p238
      $region66: #{minet_lnl_forward.1} parent=63 // pred_check_branch
        %1727 = sbr.rel (%p1725) target = $region68
      $region67: #{minet_lnl_forward.1} parent=63 // pred_region
        %s1728 = smul.u32 2, %s21
        %p1729 = scmp.lt.s32.totalorder %s1728, 3
        %s1730 = scalar_select %p1729, %s1728, 3
        %s1731 = smul.addr %s1730, 8
        %s1732 = scalar_lea.vmem %s9, %s1731
      $region68: #{minet_lnl_forward.1} parent=63 // pred_fallthru
        _
    $region64: #{minet_lnl_forward.1} parent=5 // pred_fallthru
      _
  $region6: #{minet_lnl_forward.1} parent=0 // loop_footer
    %s19 = sadd.s32 1, %s15
  $region7: #{minet_lnl_forward.1} parent=0 // loop_footer_branch
    %14 = sbr.rel target = $region3
  $region8: #{minet_lnl_forward.1} parent=0 // loop_exit
    _

</llo_original>
